<compile_context>
chip_gen: v6e
topology: v6e:2x2x1
jax: 0.10.0
libtpu: 0.0.40
codegen_flags: <defaults>
</compile_context>

<pallas_src>
import jax
import jax.numpy as jnp
from jax import lax
from jax.experimental import pallas as pl
from jax.experimental.pallas import tpu as pltpu


_MASK_FILL = -float(2 ** 15)  # matches PyTorch masked_fill(-2**15)


def _make_kernel(inv_temp, has_bias, has_drop):
    """Kernel factory; refs = (q, k, v, [bias], [drop_scale], out)."""

    def kernel(*refs):
        q_ref, k_ref, v_ref = refs[0], refs[1], refs[2]
        i = 3
        bias_ref = None
        drop_ref = None
        if has_bias:
            bias_ref = refs[i]
            i += 1
        if has_drop:
            drop_ref = refs[i]
            i += 1
        o_ref = refs[i]

        q = q_ref[0]  # (Gb, Lq, Dk) native dtype (bf16 stays bf16 for the MXU)
        k = k_ref[0]  # (Gb, Lk, Dk)
        v = v_ref[0]  # (Gb, Lk, Dv)

        # Batched QK^T contracting the last dim of both operands (no explicit
        # transpose); accumulate in f32 on the MXU.
        s = jnp.einsum("gqd,gkd->gqk", q, k,
                       preferred_element_type=jnp.float32)
        s = s * jnp.float32(inv_temp)

        if has_bias:
            # Additive mask bias: 0 where kept, -2**15 where masked.
            # (Exact match to masked_fill after softmax as long as a row is not
            #  fully masked, since masked terms underflow to exactly 0.)
            s = s + bias_ref[0].astype(jnp.float32)

        # Numerically stable softmax along the key axis, all math in f32.
        s_max = jnp.max(s, axis=-1, keepdims=True)
        e = jnp.exp(s - s_max)
        denom = jnp.sum(e, axis=-1, keepdims=True)
        attn = e * (1.0 / denom)  # one reciprocal per row, then multiply

        if has_drop:
            # Pre-scaled keep mask: 0 or 1/(1-p), generated wrapper-side.
            attn = attn * drop_ref[0].astype(jnp.float32)

        out = jnp.einsum("gqk,gkd->gqd", attn.astype(v.dtype), v,
                         preferred_element_type=jnp.float32)
        o_ref[0] = out.astype(o_ref.dtype)

    return kernel


def scaled_dot_product_with_edge_attention(q, k, v, mask=None, *,
                                           temperature, dropout_p=0.0,
                                           dropout_rng=None, group_block=128):
    """q: (B,H,N,Lq,Dk)  k: (B,H,N,Lk,Dk)  v: (B,H,N,Lk,Dv)
       mask: broadcastable to (B,H,N,Lq,Lk) or None."""
    B, H, N, Lq, Dk = q.shape
    Lk = k.shape[3]
    Dv = v.shape[4]
    HN = H * N

    # Groups per grid step (amortizes per-step pipeline overhead); pad H*N up
    # to a multiple of Gb if needed (padded groups compute zeros, discarded).
    Gb = min(int(group_block), HN)
    nblk = -(-HN // Gb)
    HNp = nblk * Gb

    qf = q.reshape(B, HN, Lq, Dk)
    kf = k.reshape(B, HN, Lk, Dk)
    vf = v.reshape(B, HN, Lk, Dv)
    if HNp != HN:
        pad = [(0, 0), (0, HNp - HN), (0, 0), (0, 0)]
        qf = jnp.pad(qf, pad)
        kf = jnp.pad(kf, pad)
        vf = jnp.pad(vf, pad)

    inputs = [qf, kf, vf]
    in_specs = [
        pl.BlockSpec((1, Gb, Lq, Dk), lambda b, j: (b, j, 0, 0)),
        pl.BlockSpec((1, Gb, Lk, Dk), lambda b, j: (b, j, 0, 0)),
        pl.BlockSpec((1, Gb, Lk, Dv), lambda b, j: (b, j, 0, 0)),
    ]

    has_bias = mask is not None
    if has_bias:
        m = mask
        while m.ndim < 5:                      # normalize to 5-D broadcastable
            m = m[None]
        if m.shape[1] == 1 and m.shape[2] == 1:
            # Compact path: bias only varies per batch; broadcast over the H*N
            # groups via the index_map (no HBM replication, tiny DMA).
            bias = jnp.where(m[:, 0, 0] == 0, jnp.float32(_MASK_FILL),
                             jnp.float32(0.0))
            bias = jnp.broadcast_to(bias, (B, Lq, Lk)).astype(jnp.float32)
            inputs.append(bias)
            in_specs.append(pl.BlockSpec((1, Lq, Lk), lambda b, j: (b, 0, 0)))
        else:
            bias = jnp.where(jnp.broadcast_to(m, (B, H, N, Lq, Lk)) == 0,
                             jnp.float32(_MASK_FILL), jnp.float32(0.0))
            bias = bias.reshape(B, HN, Lq, Lk).astype(jnp.float32)
            if HNp != HN:
                bias = jnp.pad(bias, [(0, 0), (0, HNp - HN), (0, 0), (0, 0)])
            inputs.append(bias)
            in_specs.append(
                pl.BlockSpec((1, Gb, Lq, Lk), lambda b, j: (b, j, 0, 0)))

    has_drop = float(dropout_p) > 0.0
    if has_drop:
        if dropout_rng is None:
            dropout_rng = jax.random.PRNGKey(0)
        keep = jax.random.bernoulli(dropout_rng, 1.0 - float(dropout_p),
                                    (B, HNp, Lq, Lk))
        drop_scale = (keep * (1.0 / (1.0 - float(dropout_p)))).astype(jnp.bfloat16)
        inputs.append(drop_scale)
        in_specs.append(
            pl.BlockSpec((1, Gb, Lq, Lk), lambda b, j: (b, j, 0, 0)))

    kernel = _make_kernel(1.0 / float(temperature), has_bias, has_drop)

    itemsize = lambda a: a.size * a.dtype.itemsize
    bytes_accessed = int(sum(itemsize(a) for a in inputs)
                         + B * HNp * Lq * Dv * q.dtype.itemsize)
    cost = pl.CostEstimate(
        flops=int(2 * B * HNp * Lq * Lk * (Dk + Dv)),
        transcendentals=int(B * HNp * Lq * Lk),
        bytes_accessed=bytes_accessed)

    out = pl.pallas_call(
        kernel,
        out_shape=jax.ShapeDtypeStruct((B, HNp, Lq, Dv), q.dtype),
        grid_spec=pltpu.PrefetchScalarGridSpec(
            num_scalar_prefetch=0,
            grid=(B, nblk),
            in_specs=in_specs,
            out_specs=pl.BlockSpec((1, Gb, Lq, Dv), lambda b, j: (b, j, 0, 0)),
        ),
        compiler_params=pltpu.CompilerParams(
            dimension_semantics=("parallel", "parallel"),
            vmem_limit_bytes=32 * 1024 * 1024),
        cost_estimate=cost,
    )(*inputs)

    return out[:, :HN].reshape(B, H, N, Lq, Dv)


def _reference(q, k, v, mask, temperature):
    # Pure-JAX reference of the forward pass (dropout disabled), PyTorch
    # masked_fill semantics; HIGHEST precision so f32 matmuls stay f32 on TPU.
    attn = jnp.einsum("bhnqd,bhnkd->bhnqk", q, k,
                      precision=lax.Precision.HIGHEST) / temperature
    if mask is not None:
        attn = jnp.where(mask == 0, _MASK_FILL, attn)
    attn = jax.nn.softmax(attn, axis=-1)
    return jnp.einsum("bhnqk,bhnkd->bhnqd", attn, v,
                      precision=lax.Precision.HIGHEST)


if __name__ == "__main__":
    # Small shapes consistent with the module's 5-D q/k/v convention.
    B, H, N, L, Dk, Dv = 2, 2, 4, 8, 16, 16
    temperature = Dk ** 0.5  # pigvae uses k_dim ** 0.5

    key = jax.random.PRNGKey(0)
    kq, kk, kv, km, kd = jax.random.split(key, 5)
    q = jax.random.normal(kq, (B, H, N, L, Dk), dtype=jnp.float32)
    k = jax.random.normal(kk, (B, H, N, L, Dk), dtype=jnp.float32)
    v = jax.random.normal(kv, (B, H, N, L, Dv), dtype=jnp.float32)
    # PyTorch-style 0/1 mask, broadcast over heads / edge groups; keep the
    # diagonal unmasked so no row is fully masked.
    mask = (jax.random.uniform(km, (B, 1, 1, L, L)) > 0.2).astype(jnp.float32)
    mask = jnp.maximum(mask, jnp.eye(L, dtype=jnp.float32)[None, None, None])

    # Masked, eval-mode (dropout = 0): check against the pure-JAX reference.
    out = scaled_dot_product_with_edge_attention(
        q, k, v, mask, temperature=temperature, dropout_p=0.0)
    out = jax.block_until_ready(out)
    ref = _reference(q, k, v, mask, temperature)
    assert out.shape == (B, H, N, L, Dv)
    assert jnp.allclose(out, ref, atol=1e-4, rtol=1e-4), "mismatch vs reference"

    # Maskless path (separate kernel variant, no dummy all-ones mask DMA).
    out_nm = scaled_dot_product_with_edge_attention(
        q, k, v, None, temperature=temperature, dropout_p=0.0)
    out_nm = jax.block_until_ready(out_nm)
    ref_nm = _reference(q, k, v, None, temperature)
    assert jnp.allclose(out_nm, ref_nm, atol=1e-4, rtol=1e-4), "mismatch (no mask)"

    # Training-mode dropout (module default p=0.1), wrapper-side RNG.
    out_do = scaled_dot_product_with_edge_attention(
        q, k, v, mask, temperature=temperature, dropout_p=0.1, dropout_rng=kd)
    out_do = jax.block_until_ready(out_do)
    assert out_do.shape == (B, H, N, L, Dv)
    assert bool(jnp.all(jnp.isfinite(out_do)))

    print("KERNEL_OK")
</pallas_src>

<mosaic_0001>
module attributes {stable_mosaic.version = 11 : i64} {
  func.func @kernel(%arg0: i32, %arg1: i32, %arg2: memref<1x8x8x16xf32, #tpu.memory_space<vmem>>, %arg3: memref<1x8x8x16xf32, #tpu.memory_space<vmem>>, %arg4: memref<1x8x8x16xf32, #tpu.memory_space<vmem>>, %arg5: memref<1x8x8xf32, #tpu.memory_space<vmem>>, %arg6: memref<1x8x8x16xf32, #tpu.memory_space<vmem>>) attributes {dimension_semantics = [#tpu.dimension_semantics<parallel>, #tpu.dimension_semantics<parallel>], iteration_bounds = array<i64: 2, 1>, scalar_prefetch = 0 : i64, scratch_operands = 0 : i64, tpu.core_type = #tpu.core_type<tc>, window_params = [{transform_indices = @transform_0, window_bounds = array<i64: 1, 8, 8, 16>}, {transform_indices = @transform_1, window_bounds = array<i64: 1, 8, 8, 16>}, {transform_indices = @transform_2, window_bounds = array<i64: 1, 8, 8, 16>}, {transform_indices = @transform_3, window_bounds = array<i64: 1, 8, 8>}, {transform_indices = @transform_4, window_bounds = array<i64: 1, 8, 8, 16>}]} {
    %c0 = arith.constant 0 : index
    %c0_0 = arith.constant 0 : index
    %c0_1 = arith.constant 0 : index
    %c0_2 = arith.constant 0 : index
    %0 = vector.load %arg2[%c0, %c0_0, %c0_1, %c0_2] : memref<1x8x8x16xf32, #tpu.memory_space<vmem>>, vector<1x8x8x16xf32>
    %1 = vector.shape_cast %0 : vector<1x8x8x16xf32> to vector<8x8x16xf32>
    %c0_3 = arith.constant 0 : index
    %c0_4 = arith.constant 0 : index
    %c0_5 = arith.constant 0 : index
    %c0_6 = arith.constant 0 : index
    %2 = vector.load %arg3[%c0_3, %c0_4, %c0_5, %c0_6] : memref<1x8x8x16xf32, #tpu.memory_space<vmem>>, vector<1x8x8x16xf32>
    %3 = vector.shape_cast %2 : vector<1x8x8x16xf32> to vector<8x8x16xf32>
    %c0_7 = arith.constant 0 : index
    %c0_8 = arith.constant 0 : index
    %c0_9 = arith.constant 0 : index
    %c0_10 = arith.constant 0 : index
    %4 = vector.load %arg4[%c0_7, %c0_8, %c0_9, %c0_10] : memref<1x8x8x16xf32, #tpu.memory_space<vmem>>, vector<1x8x8x16xf32>
    %5 = vector.shape_cast %4 : vector<1x8x8x16xf32> to vector<8x8x16xf32>
    "tpu.trace_start"() <{level = 10 : i32, message = "gqd,gkd->gqk"}> : () -> ()
    %cst = arith.constant dense<0.000000e+00> : vector<8x8x8xf32>
    %6 = tpu.matmul %1, %3, %cst {dimension_numbers = #tpu.dot_dimension_numbers<[2], [2], [1], [1], [0, 0, 0, 1, 1, 1], [0], [0]>} : vector<8x8x16xf32>, vector<8x8x16xf32>, vector<8x8x8xf32> -> vector<8x8x8xf32>
    "tpu.trace_stop"() : () -> ()
    %cst_11 = arith.constant 2.500000e-01 : f32
    %7 = vector.broadcast %cst_11 : f32 to vector<8x8x8xf32>
    %8 = arith.mulf %6, %7 : vector<8x8x8xf32>
    %c0_12 = arith.constant 0 : index
    %c0_13 = arith.constant 0 : index
    %c0_14 = arith.constant 0 : index
    %9 = vector.load %arg5[%c0_12, %c0_13, %c0_14] : memref<1x8x8xf32, #tpu.memory_space<vmem>>, vector<1x8x8xf32>
    %10 = vector.shape_cast %9 : vector<1x8x8xf32> to vector<8x8xf32>
    %11 = vector.shape_cast %10 : vector<8x8xf32> to vector<1x8x8xf32>
    %12 = vector.broadcast %11 : vector<1x8x8xf32> to vector<8x8x8xf32>
    %13 = arith.addf %8, %12 : vector<8x8x8xf32>
    %cst_15 = arith.constant dense<0xFF800000> : vector<8x8xf32>
    %14 = vector.multi_reduction <maximumf>, %13, %cst_15 [2] : vector<8x8x8xf32> to vector<8x8xf32>
    %15 = vector.shape_cast %14 : vector<8x8xf32> to vector<8x8x1xf32>
    %16 = vector.broadcast %15 : vector<8x8x1xf32> to vector<8x8x8xf32>
    %17 = arith.subf %13, %16 : vector<8x8x8xf32>
    %18 = math.exp %17 : vector<8x8x8xf32>
    %cst_16 = arith.constant dense<0.000000e+00> : vector<8x8xf32>
    %19 = vector.multi_reduction <add>, %18, %cst_16 [2] : vector<8x8x8xf32> to vector<8x8xf32>
    %20 = vector.shape_cast %19 : vector<8x8xf32> to vector<8x8x1xf32>
    %cst_17 = arith.constant 1.000000e+00 : f32
    %21 = vector.broadcast %cst_17 : f32 to vector<8x8x1xf32>
    %22 = arith.divf %21, %20 : vector<8x8x1xf32>
    %23 = vector.broadcast %22 : vector<8x8x1xf32> to vector<8x8x8xf32>
    %24 = arith.mulf %18, %23 : vector<8x8x8xf32>
    "tpu.trace_start"() <{level = 10 : i32, message = "gqk,gkd->gqd"}> : () -> ()
    %cst_18 = arith.constant dense<0.000000e+00> : vector<8x8x16xf32>
    %25 = tpu.matmul %24, %5, %cst_18 {dimension_numbers = #tpu.dot_dimension_numbers<[2], [1], [1], [2], [0, 0, 0, 1, 1, 2], [0], [0]>} : vector<8x8x8xf32>, vector<8x8x16xf32>, vector<8x8x16xf32> -> vector<8x8x16xf32>
    "tpu.trace_stop"() : () -> ()
    %c0_19 = arith.constant 0 : index
    %c0_20 = arith.constant 0 : index
    %c0_21 = arith.constant 0 : index
    %c0_22 = arith.constant 0 : index
    %26 = vector.load %arg6[%c0_19, %c0_20, %c0_21, %c0_22] : memref<1x8x8x16xf32, #tpu.memory_space<vmem>>, vector<1x8x8x16xf32>
    %27 = vector.shape_cast %26 : vector<1x8x8x16xf32> to vector<8x8x16xf32>
    %28 = vector.shape_cast %25 : vector<8x8x16xf32> to vector<1x8x8x16xf32>
    tpu.vector_store %arg6[%c0_19, %c0_20, %c0_21, %c0_22], %28 {strides = array<i32>} : memref<1x8x8x16xf32, #tpu.memory_space<vmem>>, vector<1x8x8x16xf32>,
    return
  }
  func.func @transform_0(%arg0: i32, %arg1: i32) -> (i32, i32, i32, i32) {
    %c0_i32 = arith.constant 0 : i32
    %c0_i32_0 = arith.constant 0 : i32
    %c0_i32_1 = arith.constant 0 : i32
    return %arg0, %arg1, %c0_i32, %c0_i32_0 : i32, i32, i32, i32
  }
  func.func @transform_1(%arg0: i32, %arg1: i32) -> (i32, i32, i32, i32) {
    %c0_i32 = arith.constant 0 : i32
    %c0_i32_0 = arith.constant 0 : i32
    %c0_i32_1 = arith.constant 0 : i32
    return %arg0, %arg1, %c0_i32, %c0_i32_0 : i32, i32, i32, i32
  }
  func.func @transform_2(%arg0: i32, %arg1: i32) -> (i32, i32, i32, i32) {
    %c0_i32 = arith.constant 0 : i32
    %c0_i32_0 = arith.constant 0 : i32
    %c0_i32_1 = arith.constant 0 : i32
    return %arg0, %arg1, %c0_i32, %c0_i32_0 : i32, i32, i32, i32
  }
  func.func @transform_3(%arg0: i32, %arg1: i32) -> (i32, i32, i32) {
    %c0_i32 = arith.constant 0 : i32
    %c0_i32_0 = arith.constant 0 : i32
    %c0_i32_1 = arith.constant 0 : i32
    return %arg0, %c0_i32, %c0_i32_0 : i32, i32, i32
  }
  func.func @transform_4(%arg0: i32, %arg1: i32) -> (i32, i32, i32, i32) {
    %c0_i32 = arith.constant 0 : i32
    %c0_i32_0 = arith.constant 0 : i32
    %c0_i32_1 = arith.constant 0 : i32
    return %arg0, %arg1, %c0_i32, %c0_i32_0 : i32, i32, i32, i32
  }
}

</mosaic_0001>

<llo_original>
// kernel: tpu_custom_call.1
$region0: #{tpu_custom_call.1}
  #allocation0 [shape = 'u32[]', space=smem, size = 0x4, offset = 0x4, fixed_abs, tag = 'smem constant byte address 0x4 - core index']
  #allocation1 [shape = 'u32[144,128]{1,0:T(1,128)}', space=vmem, size = 0x12000, scoped, tag = 'internal scratch']
  %s0 = inlined_call_operand.hbm [shape: f32[2,8,8,16], index: 0, kind: input, shape index: {}]
  %s1 = inlined_call_operand.hbm [shape: f32[2,8,8,16], index: 1, kind: input, shape index: {}]
  %s2 = inlined_call_operand.hbm [shape: f32[2,8,8,16], index: 2, kind: input, shape index: {}]
  %s3 = inlined_call_operand.hbm [shape: f32[2,8,8], index: 3, kind: input, shape index: {}]
  %s4 = inlined_call_operand.hbm [shape: f32[2,8,8,16], index: 4, kind: output, shape index: {}]
  %s5 = sld [smem:[#allocation0]]
  $region65: #{tpu_custom_call.1} parent=0
    _
  %s7 = ssub.s32 1, %s5
  %s8 = scalar_select 0, %s7, %s5
  $region1: #{tpu_custom_call.1} parent=0
    #allocation2 [shape = 'u8[65536]{0}', space=vmem, size = 0x10000, scoped, tag = 'input window, operand 0']
    #allocation3 [shape = 's32[2]{0}', space=sflag, size = 0x8, scoped, tag = 'scoped memory for tpu_custom_call.1']
    #allocation4 [shape = 's32[2]{0}', space=sflag, size = 0x8, scoped, tag = 'scoped memory for tpu_custom_call.1']
    #allocation5 [shape = 'u8[65536]{0}', space=vmem, size = 0x10000, scoped, tag = 'input window, operand 1']
    #allocation6 [shape = 's32[2]{0}', space=sflag, size = 0x8, scoped, tag = 'scoped memory for tpu_custom_call.1']
    #allocation7 [shape = 'u8[65536]{0}', space=vmem, size = 0x10000, scoped, tag = 'input window, operand 2']
    #allocation8 [shape = 'u8[8192]{0}', space=vmem, size = 0x2000, scoped, tag = 'input window, operand 3']
    #allocation9 [shape = 's32[2]{0}', space=sflag, size = 0x8, scoped, tag = 'scoped memory for tpu_custom_call.1']
    #allocation10 [shape = 'u8[65536]{0}', space=vmem, size = 0x10000, scoped, tag = 'output window, operand 0']
    %9 = vsyncpa [#allocation3], 0
    %s10 = scalar_lea.sflag [#allocation3], 1
    %11 = vsyncpa %s10, 0
    %12 = vsyncpa [#allocation6], 0
    %s13 = scalar_lea.sflag [#allocation6], 1
    %14 = vsyncpa %s13, 0
    %15 = vsyncpa [#allocation9], 0
    %s16 = scalar_lea.sflag [#allocation9], 1
    %17 = vsyncpa %s16, 0
    %18 = vsyncpa [#allocation4], 0
    %s19 = scalar_lea.sflag [#allocation4], 1
    %20 = vsyncpa %s19, 0
    loop: start=0, step=1, limit=4
    $region2: #{tpu_custom_call.1} parent=1 // loop_pre_header
      _
    $region3: #{tpu_custom_call.1} parent=1 // loop_header
      %s22 = sphi 0, %s26
      %p23 = scmp.ge.s32.totalorder %s22, 4
      %s29 = sphi 0, %s41
      %s30 = sphi 0, %s37
      %s31 = sphi 0, %s29
      %s32 = sphi 0, %s30
      %s33 = sphi 0, %s31
      %s34 = sphi 0, %s32
      %s46 = sphi 0, %s48
      %s49 = sphi 0, %s46
      %s50 = sphi 0, %s49
      %s66 = sphi 0, %s50
      %s74 = sphi 0, %s76
      %s77 = sphi 0, %s74
      %s78 = sphi 0, %s77
      %s94 = sphi 0, %s78
      %s102 = sphi 0, %s104
      %s105 = sphi 0, %s102
      %s106 = sphi 0, %s105
      %s122 = sphi 0, %s106
      %s128 = sphi 0, %s130
      %s131 = sphi 0, %s128
      %s132 = sphi 0, %s131
      %s148 = sphi 0, %s132
      %s156 = sphi 0, %s158
      %s159 = sphi 0, %s156
      %s160 = sphi 0, %s159
      %s176 = sphi 0, %s160
    $region4: #{tpu_custom_call.1} parent=1 // loop_header_branch
      %25 = sbr.rel (%p23) target = $region8
    $region5: #{tpu_custom_call.1} parent=1 // loop_body
      %s27 = ssub.s32 %s22, 1
      %s28 = ssub.s32 %s22, 2
      %s35 = sadd.s32 1, %s30
      %p36 = scmp.ge.s32.totalorder %s35, 1
      %s37 = scalar_select %p36, 0, %s35
      %s38 = sadd.s32 1, %s29
      %s39 = scalar_select %p36, %s38, %s29
      %p40 = scmp.ge.s32.totalorder %s39, 2
      %s41 = scalar_select %p40, 0, %s39
      %s42 = ssub.s32 %s29, %s41
      %s43 = ssub.s32 %s30, %s37
      %s44 = sor.u32 %s42, %s43
      %p45 = scmp.eq.s32.totalorder %s44, 0
      %s47 = sadd.s32 %s46, 1
      %s48 = scalar_select %p45, %s46, %s47
      %p51 = pneg %p45
      %p52 = scmp.eq.s32.totalorder %s22, 1
      %p53 = por %p51, %p52
      %p54 = scmp.ne.s32.totalorder %s46, %s49
      %p55 = scmp.eq.s32.totalorder %s22, 0
      %p56 = por %p54, %p55
      %p57 = scmp.ne.s32.totalorder %s46, %s49
      %p58 = scmp.eq.s32.totalorder %s27, 1
      %p59 = por %p57, %p58
      %p60 = scmp.ne.s32.totalorder %s49, %s50
      %p61 = scmp.eq.s32.totalorder %s27, 0
      %p62 = por %p60, %p61
      %p63 = scmp.ne.s32.totalorder %s49, %s50
      %p64 = scmp.eq.s32.totalorder %s28, 1
      %p65 = por %p63, %p64
      %p67 = scmp.ne.s32.totalorder %s50, %s66
      %p68 = scmp.eq.s32.totalorder %s28, 0
      %p69 = por %p67, %p68
      %s70 = ssub.s32 %s29, %s41
      %s71 = ssub.s32 %s30, %s37
      %s72 = sor.u32 %s70, %s71
      %p73 = scmp.eq.s32.totalorder %s72, 0
      %s75 = sadd.s32 %s74, 1
      %s76 = scalar_select %p73, %s74, %s75
      %p79 = pneg %p73
      %p80 = scmp.eq.s32.totalorder %s22, 1
      %p81 = por %p79, %p80
      %p82 = scmp.ne.s32.totalorder %s74, %s77
      %p83 = scmp.eq.s32.totalorder %s22, 0
      %p84 = por %p82, %p83
      %p85 = scmp.ne.s32.totalorder %s74, %s77
      %p86 = scmp.eq.s32.totalorder %s27, 1
      %p87 = por %p85, %p86
      %p88 = scmp.ne.s32.totalorder %s77, %s78
      %p89 = scmp.eq.s32.totalorder %s27, 0
      %p90 = por %p88, %p89
      %p91 = scmp.ne.s32.totalorder %s77, %s78
      %p92 = scmp.eq.s32.totalorder %s28, 1
      %p93 = por %p91, %p92
      %p95 = scmp.ne.s32.totalorder %s78, %s94
      %p96 = scmp.eq.s32.totalorder %s28, 0
      %p97 = por %p95, %p96
      %s98 = ssub.s32 %s29, %s41
      %s99 = ssub.s32 %s30, %s37
      %s100 = sor.u32 %s98, %s99
      %p101 = scmp.eq.s32.totalorder %s100, 0
      %s103 = sadd.s32 %s102, 1
      %s104 = scalar_select %p101, %s102, %s103
      %p107 = pneg %p101
      %p108 = scmp.eq.s32.totalorder %s22, 1
      %p109 = por %p107, %p108
      %p110 = scmp.ne.s32.totalorder %s102, %s105
      %p111 = scmp.eq.s32.totalorder %s22, 0
      %p112 = por %p110, %p111
      %p113 = scmp.ne.s32.totalorder %s102, %s105
      %p114 = scmp.eq.s32.totalorder %s27, 1
      %p115 = por %p113, %p114
      %p116 = scmp.ne.s32.totalorder %s105, %s106
      %p117 = scmp.eq.s32.totalorder %s27, 0
      %p118 = por %p116, %p117
      %p119 = scmp.ne.s32.totalorder %s105, %s106
      %p120 = scmp.eq.s32.totalorder %s28, 1
      %p121 = por %p119, %p120
      %p123 = scmp.ne.s32.totalorder %s106, %s122
      %p124 = scmp.eq.s32.totalorder %s28, 0
      %p125 = por %p123, %p124
      %s126 = ssub.s32 %s29, %s41
      %p127 = scmp.eq.s32.totalorder %s126, 0
      %s129 = sadd.s32 %s128, 1
      %s130 = scalar_select %p127, %s128, %s129
      %p133 = pneg %p127
      %p134 = scmp.eq.s32.totalorder %s22, 1
      %p135 = por %p133, %p134
      %p136 = scmp.ne.s32.totalorder %s128, %s131
      %p137 = scmp.eq.s32.totalorder %s22, 0
      %p138 = por %p136, %p137
      %p139 = scmp.ne.s32.totalorder %s128, %s131
      %p140 = scmp.eq.s32.totalorder %s27, 1
      %p141 = por %p139, %p140
      %p142 = scmp.ne.s32.totalorder %s131, %s132
      %p143 = scmp.eq.s32.totalorder %s27, 0
      %p144 = por %p142, %p143
      %p145 = scmp.ne.s32.totalorder %s131, %s132
      %p146 = scmp.eq.s32.totalorder %s28, 1
      %p147 = por %p145, %p146
      %p149 = scmp.ne.s32.totalorder %s132, %s148
      %p150 = scmp.eq.s32.totalorder %s28, 0
      %p151 = por %p149, %p150
      %s152 = ssub.s32 %s29, %s41
      %s153 = ssub.s32 %s30, %s37
      %s154 = sor.u32 %s152, %s153
      %p155 = scmp.eq.s32.totalorder %s154, 0
      %s157 = sadd.s32 %s156, 1
      %s158 = scalar_select %p155, %s156, %s157
      %p161 = pneg %p155
      %p162 = scmp.eq.s32.totalorder %s22, 1
      %p163 = por %p161, %p162
      %p164 = scmp.ne.s32.totalorder %s156, %s159
      %p165 = scmp.eq.s32.totalorder %s22, 0
      %p166 = por %p164, %p165
      %p167 = scmp.ne.s32.totalorder %s156, %s159
      %p168 = scmp.eq.s32.totalorder %s27, 1
      %p169 = por %p167, %p168
      %p170 = scmp.ne.s32.totalorder %s159, %s160
      %p171 = scmp.eq.s32.totalorder %s27, 0
      %p172 = por %p170, %p171
      %p173 = scmp.ne.s32.totalorder %s159, %s160
      %p174 = scmp.eq.s32.totalorder %s28, 1
      %p175 = por %p173, %p174
      %p177 = scmp.ne.s32.totalorder %s160, %s176
      %p178 = scmp.eq.s32.totalorder %s28, 0
      %p179 = por %p177, %p178
      %p180 = scmp.le.s32.totalorder 1, %s22
      %p181 = scmp.lt.s32.totalorder %s22, 3
      %p182 = pnand %p180, %p181
      %p183 = pneg %p182
      // Predicated region
      $region9: #{tpu_custom_call.1} parent=5 // pred_check
        _
      $region10: #{tpu_custom_call.1} parent=5 // pred_check_branch
        %185 = sbr.rel (%p182) target = $region12
      $region11: #{tpu_custom_call.1} parent=5 // pred_region
        %s186 = ssub.s32 %s22, 1
      $region12: #{tpu_custom_call.1} parent=5 // pred_fallthru
        _
      %p187 = scmp.lt.s32.totalorder %s22, 2
      // Predicated region
      $region13: #{tpu_custom_call.1} parent=5 // pred_check
        %p188 = pneg %p187
      $region14: #{tpu_custom_call.1} parent=5 // pred_check_branch
        %190 = sbr.rel (%p188) target = $region16
      $region15: #{tpu_custom_call.1} parent=5 // pred_region
        // Predicated region
        $region17: #{tpu_custom_call.1} parent=15 // pred_check
          %p191 = pneg %p56
        $region18: #{tpu_custom_call.1} parent=15 // pred_check_branch
          %193 = sbr.rel (%p191) target = $region20
        $region19: #{tpu_custom_call.1} parent=15 // pred_region
          %s194 = sand.u32 %s46, 1
          %s195 = scalar_lea.sflag [#allocation3], %s194
          %s196 = sand.u32 %s46, 1
          %s197 = smul.addr %s196, 64
          %s198 = scalar_lea.vmem [#allocation2], %s197
          %s199 = smul.u32 8, %s30
          %s201 = ssub.s32 1024, 1024
          %202 = vsyncadd %s195, %s201
          %s203 = smul.addr %s29, 8
          %s204 = sadd.s32 %s199, %s203
          %s205 = smul.addr %s204, 128
          %s206 = scalar_lea.hbm %s0, %s205
          %s207 = sshll.u32 %s198, 4
          %s208 = int_to_ptr.vmem [resolvable:$true] %s207
          %213 = dma.hbm_to_vmem [thread:$0]  %s206, 1024, %s208, %s195, 128, 128, 8
        $region20: #{tpu_custom_call.1} parent=15 // pred_fallthru
          _
        // Predicated region
        $region21: #{tpu_custom_call.1} parent=15 // pred_check
          %p214 = pneg %p84
        $region22: #{tpu_custom_call.1} parent=15 // pred_check_branch
          %216 = sbr.rel (%p214) target = $region24
        $region23: #{tpu_custom_call.1} parent=15 // pred_region
          %s217 = sand.u32 %s22, 1
          %s218 = scalar_lea.sflag [#allocation6], %s217
          %s219 = sand.u32 %s74, 1
          %s220 = smul.addr %s219, 64
          %s221 = scalar_lea.vmem [#allocation5], %s220
          %s222 = smul.u32 8, %s30
          %s224 = ssub.s32 1024, 1024
          %225 = vsyncadd %s218, %s224
          %s226 = smul.addr %s29, 8
          %s227 = sadd.s32 %s222, %s226
          %s228 = smul.addr %s227, 128
          %s229 = scalar_lea.hbm %s1, %s228
          %s230 = sshll.u32 %s221, 4
          %s231 = int_to_ptr.vmem [resolvable:$true] %s230
          %236 = dma.hbm_to_vmem [thread:$0]  %s229, 1024, %s231, %s218, 128, 128, 8
        $region24: #{tpu_custom_call.1} parent=15 // pred_fallthru
          _
        // Predicated region
        $region25: #{tpu_custom_call.1} parent=15 // pred_check
          %p237 = pneg %p112
        $region26: #{tpu_custom_call.1} parent=15 // pred_check_branch
          %239 = sbr.rel (%p237) target = $region28
        $region27: #{tpu_custom_call.1} parent=15 // pred_region
          %s240 = sand.u32 %s22, 1
          %s241 = scalar_lea.sflag [#allocation6], %s240
          %s242 = sand.u32 %s102, 1
          %s243 = smul.addr %s242, 64
          %s244 = scalar_lea.vmem [#allocation7], %s243
          %s245 = smul.u32 8, %s30
          %s247 = ssub.s32 1024, 1024
          %248 = vsyncadd %s241, %s247
          %s249 = smul.addr %s29, 8
          %s250 = sadd.s32 %s245, %s249
          %s251 = smul.addr %s250, 128
          %s252 = scalar_lea.hbm %s2, %s251
          %s253 = sshll.u32 %s244, 4
          %s254 = int_to_ptr.vmem [resolvable:$true] %s253
          %259 = dma.hbm_to_vmem [thread:$0]  %s252, 1024, %s254, %s241, 128, 128, 8
        $region28: #{tpu_custom_call.1} parent=15 // pred_fallthru
          _
        // Predicated region
        $region29: #{tpu_custom_call.1} parent=15 // pred_check
          %p260 = pneg %p138
        $region30: #{tpu_custom_call.1} parent=15 // pred_check_branch
          %262 = sbr.rel (%p260) target = $region32
        $region31: #{tpu_custom_call.1} parent=15 // pred_region
          %s263 = sand.u32 %s128, 1
          %s264 = scalar_lea.sflag [#allocation9], %s263
          %s265 = sand.u32 %s128, 1
          %s266 = smul.addr %s265, 8
          %s267 = scalar_lea.vmem [#allocation8], %s266
          %s269 = ssub.s32 128, 128
          %270 = vsyncadd %s264, %s269
          %s271 = smul.addr %s29, 128
          %s272 = scalar_lea.hbm %s3, %s271
          %s274 = sshll.u32 %s267, 4
          %s275 = int_to_ptr.vmem [resolvable:$true] %s274
          %277 = dma.hbm_to_vmem [thread:$0]  %s272, 128, %s275, %s264
        $region32: #{tpu_custom_call.1} parent=15 // pred_fallthru
          _
      $region16: #{tpu_custom_call.1} parent=5 // pred_fallthru
        _
      %p278 = scmp.le.s32.totalorder 1, %s22
      %p279 = scmp.lt.s32.totalorder %s22, 3
      %p280 = pnand %p278, %p279
      %p281 = pneg %p280
      // Predicated region
      $region33: #{tpu_custom_call.1} parent=5 // pred_check
        _
      $region34: #{tpu_custom_call.1} parent=5 // pred_check_branch
        %283 = sbr.rel (%p280) target = $region36
      $region35: #{tpu_custom_call.1} parent=5 // pred_region
        %s284 = ssub.s32 %s22, 1
        %s285 = sand.u32 %s49, 1
        %s286 = scalar_lea.sflag [#allocation3], %s285
        %s287 = sand.u32 %s49, 1
        %s288 = smul.addr %s287, 64
        %s289 = scalar_lea.vmem [#allocation2], %s288
        // Predicated region
        $region37: #{tpu_custom_call.1} parent=35 // pred_check
          %p290 = pneg %p62
        $region38: #{tpu_custom_call.1} parent=35 // pred_check_branch
          %292 = sbr.rel (%p290) target = $region40
        $region39: #{tpu_custom_call.1} parent=35 // pred_region
          %293 = dma.done %s286, 1024
        $region40: #{tpu_custom_call.1} parent=35 // pred_fallthru
          _
        %s294 = sand.u32 %s27, 1
        %s295 = scalar_lea.sflag [#allocation6], %s294
        %s296 = sand.u32 %s77, 1
        %s297 = smul.addr %s296, 64
        %s298 = scalar_lea.vmem [#allocation5], %s297
        // Predicated region
        $region41: #{tpu_custom_call.1} parent=35 // pred_check
          %p299 = pneg %p90
        $region42: #{tpu_custom_call.1} parent=35 // pred_check_branch
          %301 = sbr.rel (%p299) target = $region44
        $region43: #{tpu_custom_call.1} parent=35 // pred_region
          %302 = dma.done %s295, 1024
        $region44: #{tpu_custom_call.1} parent=35 // pred_fallthru
          _
        %s303 = sand.u32 %s27, 1
        %s304 = scalar_lea.sflag [#allocation6], %s303
        %s305 = sand.u32 %s105, 1
        %s306 = smul.addr %s305, 64
        %s307 = scalar_lea.vmem [#allocation7], %s306
        // Predicated region
        $region45: #{tpu_custom_call.1} parent=35 // pred_check
          %p308 = pneg %p118
        $region46: #{tpu_custom_call.1} parent=35 // pred_check_branch
          %310 = sbr.rel (%p308) target = $region48
        $region47: #{tpu_custom_call.1} parent=35 // pred_region
          %311 = dma.done %s304, 1024
        $region48: #{tpu_custom_call.1} parent=35 // pred_fallthru
          _
        %s312 = sand.u32 %s131, 1
        %s313 = scalar_lea.sflag [#allocation9], %s312
        %s314 = sand.u32 %s131, 1
        %s315 = smul.addr %s314, 8
        %s316 = scalar_lea.vmem [#allocation8], %s315
        // Predicated region
        $region49: #{tpu_custom_call.1} parent=35 // pred_check
          %p317 = pneg %p144
        $region50: #{tpu_custom_call.1} parent=35 // pred_check_branch
          %319 = sbr.rel (%p317) target = $region52
        $region51: #{tpu_custom_call.1} parent=35 // pred_region
          %320 = dma.done %s313, 128
        $region52: #{tpu_custom_call.1} parent=35 // pred_fallthru
          _
        %s321 = sand.u32 %s49, 1
        %s322 = scalar_lea.sflag [#allocation3], %s321
        %s323 = sand.u32 %s49, 1
        %s324 = smul.addr %s323, 64
        %s325 = scalar_lea.vmem [#allocation2], %s324
        %p326 = pneg %p62
        %p327 = pneg %p59
        %s328 = sand.u32 %s27, 1
        %s329 = scalar_lea.sflag [#allocation6], %s328
        %s330 = sand.u32 %s77, 1
        %s331 = smul.addr %s330, 64
        %s332 = scalar_lea.vmem [#allocation5], %s331
        %p333 = pneg %p90
        %p334 = pneg %p87
        %s335 = sand.u32 %s27, 1
        %s336 = scalar_lea.sflag [#allocation6], %s335
        %s337 = sand.u32 %s105, 1
        %s338 = smul.addr %s337, 64
        %s339 = scalar_lea.vmem [#allocation7], %s338
        %p340 = pneg %p118
        %p341 = pneg %p115
        %s342 = sand.u32 %s131, 1
        %s343 = scalar_lea.sflag [#allocation9], %s342
        %s344 = sand.u32 %s131, 1
        %s345 = smul.addr %s344, 8
        %s346 = scalar_lea.vmem [#allocation8], %s345
        %p347 = pneg %p144
        %p348 = pneg %p141
        %p349 = pneg %p172
        %p350 = pneg %p169
        %s351 = sand.u32 %s159, 1
        %s352 = scalar_lea.sflag [#allocation4], %s351
        %s353 = sand.u32 %s159, 1
        %s354 = smul.addr %s353, 64
        %s355 = scalar_lea.vmem [#allocation10], %s354
        %s356 = smul.u32 8, %s32
        %s357 = smul.u32 8, %s32
        %s358 = smul.u32 8, %s32
        %s359 = smul.u32 8, %s32
        %v360 = vld [vmem:[%s289] sm:$0xff]
        %v361 = vld [vmem:[%s289 + $0x8] sm:$0xff]
        %v362 = vld [vmem:[%s289 + $0x10] sm:$0xff]
        %v363 = vld [vmem:[%s289 + $0x18] sm:$0xff]
        %v364 = vld [vmem:[%s289 + $0x20] sm:$0xff]
        %v365 = vld [vmem:[%s289 + $0x28] sm:$0xff]
        %v366 = vld [vmem:[%s289 + $0x30] sm:$0xff]
        %v367 = vld [vmem:[%s289 + $0x38] sm:$0xff]
        %v368 = vld [vmem:[%s298] sm:$0xff]
        %v369 = vld [vmem:[%s298 + $0x8] sm:$0xff]
        %v370 = vld [vmem:[%s298 + $0x10] sm:$0xff]
        %v371 = vld [vmem:[%s298 + $0x18] sm:$0xff]
        %v372 = vld [vmem:[%s298 + $0x20] sm:$0xff]
        %v373 = vld [vmem:[%s298 + $0x28] sm:$0xff]
        %v374 = vld [vmem:[%s298 + $0x30] sm:$0xff]
        %v375 = vld [vmem:[%s298 + $0x38] sm:$0xff]
        %v376 = vld [vmem:[%s307] sm:$0xff]
        %v377 = vld [vmem:[%s307 + $0x8] sm:$0xff]
        %v378 = vld [vmem:[%s307 + $0x10] sm:$0xff]
        %v379 = vld [vmem:[%s307 + $0x18] sm:$0xff]
        %v380 = vld [vmem:[%s307 + $0x20] sm:$0xff]
        %v381 = vld [vmem:[%s307 + $0x28] sm:$0xff]
        %v382 = vld [vmem:[%s307 + $0x30] sm:$0xff]
        %v383 = vld [vmem:[%s307 + $0x38] sm:$0xff]
        %vm384 = vcmask 130048
        %v386 = vsel %vm384, %v360, 0
        %v389 = vsel %vm384, %v368, 0
        %391 = vmatprep.subr.mxu0 0.0
        %392 = vmatpush1.xpose.msra.mxu0 0.0
        %393 = vmatprep.subr.mxu0 0.0
        %394 = vmatpush1.xpose.msra.mxu0 0.0
        %395 = vmatprep.subr.mxu0 0.0
        %396 = vmatpush1.xpose.msra.mxu0 0.0
        %397 = vmatprep.subr.mxu0 0.0
        %398 = vmatpush1.xpose.msra.mxu0 0.0
        %399 = vmatprep.subr.mxu0 0.0
        %400 = vmatpush1.xpose.msra.mxu0 0.0
        %401 = vmatprep.subr.mxu0 0.0
        %402 = vmatpush1.xpose.msra.mxu0 0.0
        %403 = vmatprep.subr.mxu0 0.0
        %404 = vmatpush1.xpose.msra.mxu0 0.0
        %405 = vmatprep.subr.mxu0 0.0
        %406 = vmatpush1.xpose.msra.mxu0 0.0
        %407 = vmatprep.subr.mxu0 0.0
        %408 = vmatpush1.xpose.msra.mxu0 0.0
        %409 = vmatprep.subr.mxu0 0.0
        %410 = vmatpush1.xpose.msra.mxu0 0.0
        %411 = vmatprep.subr.mxu0 0.0
        %412 = vmatpush1.xpose.msra.mxu0 0.0
        %413 = vmatprep.subr.mxu0 0.0
        %414 = vmatpush1.xpose.msra.mxu0 0.0
        %415 = vmatprep.subr.mxu0 0.0
        %416 = vmatpush1.xpose.msra.mxu0 0.0
        %417 = vmatprep.subr.mxu0 0.0
        %418 = vmatpush1.xpose.msra.mxu0 0.0
        %419 = vmatprep.subr.mxu0 0.0
        %420 = vmatpush1.xpose.msra.mxu0 0.0
        %421 = vmatprep.subr.mxu0 0.0
        %422 = vmatpush1.xpose.msra.mxu0 %v389
        %423 = vmatprep.subr.mxu0 0.0
        %424 = vmatpush2.xpose.msra.mxu0 0.0
        %425 = vmatprep.subr.mxu0 0.0
        %426 = vmatpush2.xpose.msra.mxu0 0.0
        %427 = vmatprep.subr.mxu0 0.0
        %428 = vmatpush2.xpose.msra.mxu0 0.0
        %429 = vmatprep.subr.mxu0 0.0
        %430 = vmatpush2.xpose.msra.mxu0 0.0
        %431 = vmatprep.subr.mxu0 0.0
        %432 = vmatpush2.xpose.msra.mxu0 0.0
        %433 = vmatprep.subr.mxu0 0.0
        %434 = vmatpush2.xpose.msra.mxu0 0.0
        %435 = vmatprep.subr.mxu0 0.0
        %436 = vmatpush2.xpose.msra.mxu0 0.0
        %437 = vmatprep.subr.mxu0 0.0
        %438 = vmatpush2.xpose.msra.mxu0 0.0
        %439 = vmatprep.subr.mxu0 0.0
        %440 = vmatpush2.xpose.msra.mxu0 0.0
        %441 = vmatprep.subr.mxu0 0.0
        %442 = vmatpush2.xpose.msra.mxu0 0.0
        %443 = vmatprep.subr.mxu0 0.0
        %444 = vmatpush2.xpose.msra.mxu0 0.0
        %445 = vmatprep.subr.mxu0 0.0
        %446 = vmatpush2.xpose.msra.mxu0 0.0
        %447 = vmatprep.subr.mxu0 0.0
        %448 = vmatpush2.xpose.msra.mxu0 0.0
        %449 = vmatprep.subr.mxu0 0.0
        %450 = vmatpush2.xpose.msra.mxu0 0.0
        %451 = vmatprep.subr.mxu0 0.0
        %452 = vmatpush2.xpose.msra.mxu0 0.0
        %453 = vmatprep.subr.mxu0 0.0
        %454 = vmatpush2.xpose.msra.mxu0 0.0
        %455 = vmatprep.mubr.f32.mxu0 0.0
        %456 = vmatmul.mubr.f32.gmra.mxu0 %v386
        %v457 = vpop.f32.mrf.mxu0
        %v458 = vadd.f32 0.0, %v457
        %v459 = vpop.f32.mrf.mxu0
        %460 = vdwg.mxu0
        %v462 = vsel %vm384, %v361, 0
        %v465 = vsel %vm384, %v369, 0
        %467 = vmatprep.subr.mxu0 0.0
        %468 = vmatpush1.xpose.msra.mxu0 0.0
        %469 = vmatprep.subr.mxu0 0.0
        %470 = vmatpush1.xpose.msra.mxu0 0.0
        %471 = vmatprep.subr.mxu0 0.0
        %472 = vmatpush1.xpose.msra.mxu0 0.0
        %473 = vmatprep.subr.mxu0 0.0
        %474 = vmatpush1.xpose.msra.mxu0 0.0
        %475 = vmatprep.subr.mxu0 0.0
        %476 = vmatpush1.xpose.msra.mxu0 0.0
        %477 = vmatprep.subr.mxu0 0.0
        %478 = vmatpush1.xpose.msra.mxu0 0.0
        %479 = vmatprep.subr.mxu0 0.0
        %480 = vmatpush1.xpose.msra.mxu0 0.0
        %481 = vmatprep.subr.mxu0 0.0
        %482 = vmatpush1.xpose.msra.mxu0 0.0
        %483 = vmatprep.subr.mxu0 0.0
        %484 = vmatpush1.xpose.msra.mxu0 0.0
        %485 = vmatprep.subr.mxu0 0.0
        %486 = vmatpush1.xpose.msra.mxu0 0.0
        %487 = vmatprep.subr.mxu0 0.0
        %488 = vmatpush1.xpose.msra.mxu0 0.0
        %489 = vmatprep.subr.mxu0 0.0
        %490 = vmatpush1.xpose.msra.mxu0 0.0
        %491 = vmatprep.subr.mxu0 0.0
        %492 = vmatpush1.xpose.msra.mxu0 0.0
        %493 = vmatprep.subr.mxu0 0.0
        %494 = vmatpush1.xpose.msra.mxu0 0.0
        %495 = vmatprep.subr.mxu0 0.0
        %496 = vmatpush1.xpose.msra.mxu0 0.0
        %497 = vmatprep.subr.mxu0 0.0
        %498 = vmatpush1.xpose.msra.mxu0 %v465
        %499 = vmatprep.subr.mxu0 0.0
        %500 = vmatpush2.xpose.msra.mxu0 0.0
        %501 = vmatprep.subr.mxu0 0.0
        %502 = vmatpush2.xpose.msra.mxu0 0.0
        %503 = vmatprep.subr.mxu0 0.0
        %504 = vmatpush2.xpose.msra.mxu0 0.0
        %505 = vmatprep.subr.mxu0 0.0
        %506 = vmatpush2.xpose.msra.mxu0 0.0
        %507 = vmatprep.subr.mxu0 0.0
        %508 = vmatpush2.xpose.msra.mxu0 0.0
        %509 = vmatprep.subr.mxu0 0.0
        %510 = vmatpush2.xpose.msra.mxu0 0.0
        %511 = vmatprep.subr.mxu0 0.0
        %512 = vmatpush2.xpose.msra.mxu0 0.0
        %513 = vmatprep.subr.mxu0 0.0
        %514 = vmatpush2.xpose.msra.mxu0 0.0
        %515 = vmatprep.subr.mxu0 0.0
        %516 = vmatpush2.xpose.msra.mxu0 0.0
        %517 = vmatprep.subr.mxu0 0.0
        %518 = vmatpush2.xpose.msra.mxu0 0.0
        %519 = vmatprep.subr.mxu0 0.0
        %520 = vmatpush2.xpose.msra.mxu0 0.0
        %521 = vmatprep.subr.mxu0 0.0
        %522 = vmatpush2.xpose.msra.mxu0 0.0
        %523 = vmatprep.subr.mxu0 0.0
        %524 = vmatpush2.xpose.msra.mxu0 0.0
        %525 = vmatprep.subr.mxu0 0.0
        %526 = vmatpush2.xpose.msra.mxu0 0.0
        %527 = vmatprep.subr.mxu0 0.0
        %528 = vmatpush2.xpose.msra.mxu0 0.0
        %529 = vmatprep.subr.mxu0 0.0
        %530 = vmatpush2.xpose.msra.mxu0 0.0
        %531 = vmatprep.mubr.f32.mxu0 0.0
        %532 = vmatmul.mubr.f32.gmra.mxu0 %v462
        %v533 = vpop.f32.mrf.mxu0
        %v534 = vadd.f32 0.0, %v533
        %v535 = vpop.f32.mrf.mxu0
        %536 = vdwg.mxu0
        %v538 = vsel %vm384, %v362, 0
        %v541 = vsel %vm384, %v370, 0
        %543 = vmatprep.subr.mxu0 0.0
        %544 = vmatpush1.xpose.msra.mxu0 0.0
        %545 = vmatprep.subr.mxu0 0.0
        %546 = vmatpush1.xpose.msra.mxu0 0.0
        %547 = vmatprep.subr.mxu0 0.0
        %548 = vmatpush1.xpose.msra.mxu0 0.0
        %549 = vmatprep.subr.mxu0 0.0
        %550 = vmatpush1.xpose.msra.mxu0 0.0
        %551 = vmatprep.subr.mxu0 0.0
        %552 = vmatpush1.xpose.msra.mxu0 0.0
        %553 = vmatprep.subr.mxu0 0.0
        %554 = vmatpush1.xpose.msra.mxu0 0.0
        %555 = vmatprep.subr.mxu0 0.0
        %556 = vmatpush1.xpose.msra.mxu0 0.0
        %557 = vmatprep.subr.mxu0 0.0
        %558 = vmatpush1.xpose.msra.mxu0 0.0
        %559 = vmatprep.subr.mxu0 0.0
        %560 = vmatpush1.xpose.msra.mxu0 0.0
        %561 = vmatprep.subr.mxu0 0.0
        %562 = vmatpush1.xpose.msra.mxu0 0.0
        %563 = vmatprep.subr.mxu0 0.0
        %564 = vmatpush1.xpose.msra.mxu0 0.0
        %565 = vmatprep.subr.mxu0 0.0
        %566 = vmatpush1.xpose.msra.mxu0 0.0
        %567 = vmatprep.subr.mxu0 0.0
        %568 = vmatpush1.xpose.msra.mxu0 0.0
        %569 = vmatprep.subr.mxu0 0.0
        %570 = vmatpush1.xpose.msra.mxu0 0.0
        %571 = vmatprep.subr.mxu0 0.0
        %572 = vmatpush1.xpose.msra.mxu0 0.0
        %573 = vmatprep.subr.mxu0 0.0
        %574 = vmatpush1.xpose.msra.mxu0 %v541
        %575 = vmatprep.subr.mxu0 0.0
        %576 = vmatpush2.xpose.msra.mxu0 0.0
        %577 = vmatprep.subr.mxu0 0.0
        %578 = vmatpush2.xpose.msra.mxu0 0.0
        %579 = vmatprep.subr.mxu0 0.0
        %580 = vmatpush2.xpose.msra.mxu0 0.0
        %581 = vmatprep.subr.mxu0 0.0
        %582 = vmatpush2.xpose.msra.mxu0 0.0
        %583 = vmatprep.subr.mxu0 0.0
        %584 = vmatpush2.xpose.msra.mxu0 0.0
        %585 = vmatprep.subr.mxu0 0.0
        %586 = vmatpush2.xpose.msra.mxu0 0.0
        %587 = vmatprep.subr.mxu0 0.0
        %588 = vmatpush2.xpose.msra.mxu0 0.0
        %589 = vmatprep.subr.mxu0 0.0
        %590 = vmatpush2.xpose.msra.mxu0 0.0
        %591 = vmatprep.subr.mxu0 0.0
        %592 = vmatpush2.xpose.msra.mxu0 0.0
        %593 = vmatprep.subr.mxu0 0.0
        %594 = vmatpush2.xpose.msra.mxu0 0.0
        %595 = vmatprep.subr.mxu0 0.0
        %596 = vmatpush2.xpose.msra.mxu0 0.0
        %597 = vmatprep.subr.mxu0 0.0
        %598 = vmatpush2.xpose.msra.mxu0 0.0
        %599 = vmatprep.subr.mxu0 0.0
        %600 = vmatpush2.xpose.msra.mxu0 0.0
        %601 = vmatprep.subr.mxu0 0.0
        %602 = vmatpush2.xpose.msra.mxu0 0.0
        %603 = vmatprep.subr.mxu0 0.0
        %604 = vmatpush2.xpose.msra.mxu0 0.0
        %605 = vmatprep.subr.mxu0 0.0
        %606 = vmatpush2.xpose.msra.mxu0 0.0
        %607 = vmatprep.mubr.f32.mxu0 0.0
        %608 = vmatmul.mubr.f32.gmra.mxu0 %v538
        %v609 = vpop.f32.mrf.mxu0
        %v610 = vadd.f32 0.0, %v609
        %v611 = vpop.f32.mrf.mxu0
        %612 = vdwg.mxu0
        %v614 = vsel %vm384, %v363, 0
        %v617 = vsel %vm384, %v371, 0
        %619 = vmatprep.subr.mxu0 0.0
        %620 = vmatpush1.xpose.msra.mxu0 0.0
        %621 = vmatprep.subr.mxu0 0.0
        %622 = vmatpush1.xpose.msra.mxu0 0.0
        %623 = vmatprep.subr.mxu0 0.0
        %624 = vmatpush1.xpose.msra.mxu0 0.0
        %625 = vmatprep.subr.mxu0 0.0
        %626 = vmatpush1.xpose.msra.mxu0 0.0
        %627 = vmatprep.subr.mxu0 0.0
        %628 = vmatpush1.xpose.msra.mxu0 0.0
        %629 = vmatprep.subr.mxu0 0.0
        %630 = vmatpush1.xpose.msra.mxu0 0.0
        %631 = vmatprep.subr.mxu0 0.0
        %632 = vmatpush1.xpose.msra.mxu0 0.0
        %633 = vmatprep.subr.mxu0 0.0
        %634 = vmatpush1.xpose.msra.mxu0 0.0
        %635 = vmatprep.subr.mxu0 0.0
        %636 = vmatpush1.xpose.msra.mxu0 0.0
        %637 = vmatprep.subr.mxu0 0.0
        %638 = vmatpush1.xpose.msra.mxu0 0.0
        %639 = vmatprep.subr.mxu0 0.0
        %640 = vmatpush1.xpose.msra.mxu0 0.0
        %641 = vmatprep.subr.mxu0 0.0
        %642 = vmatpush1.xpose.msra.mxu0 0.0
        %643 = vmatprep.subr.mxu0 0.0
        %644 = vmatpush1.xpose.msra.mxu0 0.0
        %645 = vmatprep.subr.mxu0 0.0
        %646 = vmatpush1.xpose.msra.mxu0 0.0
        %647 = vmatprep.subr.mxu0 0.0
        %648 = vmatpush1.xpose.msra.mxu0 0.0
        %649 = vmatprep.subr.mxu0 0.0
        %650 = vmatpush1.xpose.msra.mxu0 %v617
        %651 = vmatprep.subr.mxu0 0.0
        %652 = vmatpush2.xpose.msra.mxu0 0.0
        %653 = vmatprep.subr.mxu0 0.0
        %654 = vmatpush2.xpose.msra.mxu0 0.0
        %655 = vmatprep.subr.mxu0 0.0
        %656 = vmatpush2.xpose.msra.mxu0 0.0
        %657 = vmatprep.subr.mxu0 0.0
        %658 = vmatpush2.xpose.msra.mxu0 0.0
        %659 = vmatprep.subr.mxu0 0.0
        %660 = vmatpush2.xpose.msra.mxu0 0.0
        %661 = vmatprep.subr.mxu0 0.0
        %662 = vmatpush2.xpose.msra.mxu0 0.0
        %663 = vmatprep.subr.mxu0 0.0
        %664 = vmatpush2.xpose.msra.mxu0 0.0
        %665 = vmatprep.subr.mxu0 0.0
        %666 = vmatpush2.xpose.msra.mxu0 0.0
        %667 = vmatprep.subr.mxu0 0.0
        %668 = vmatpush2.xpose.msra.mxu0 0.0
        %669 = vmatprep.subr.mxu0 0.0
        %670 = vmatpush2.xpose.msra.mxu0 0.0
        %671 = vmatprep.subr.mxu0 0.0
        %672 = vmatpush2.xpose.msra.mxu0 0.0
        %673 = vmatprep.subr.mxu0 0.0
        %674 = vmatpush2.xpose.msra.mxu0 0.0
        %675 = vmatprep.subr.mxu0 0.0
        %676 = vmatpush2.xpose.msra.mxu0 0.0
        %677 = vmatprep.subr.mxu0 0.0
        %678 = vmatpush2.xpose.msra.mxu0 0.0
        %679 = vmatprep.subr.mxu0 0.0
        %680 = vmatpush2.xpose.msra.mxu0 0.0
        %681 = vmatprep.subr.mxu0 0.0
        %682 = vmatpush2.xpose.msra.mxu0 0.0
        %683 = vmatprep.mubr.f32.mxu0 0.0
        %684 = vmatmul.mubr.f32.gmra.mxu0 %v614
        %v685 = vpop.f32.mrf.mxu0
        %v686 = vadd.f32 0.0, %v685
        %v687 = vpop.f32.mrf.mxu0
        %688 = vdwg.mxu0
        %v690 = vsel %vm384, %v364, 0
        %v693 = vsel %vm384, %v372, 0
        %695 = vmatprep.subr.mxu0 0.0
        %696 = vmatpush1.xpose.msra.mxu0 0.0
        %697 = vmatprep.subr.mxu0 0.0
        %698 = vmatpush1.xpose.msra.mxu0 0.0
        %699 = vmatprep.subr.mxu0 0.0
        %700 = vmatpush1.xpose.msra.mxu0 0.0
        %701 = vmatprep.subr.mxu0 0.0
        %702 = vmatpush1.xpose.msra.mxu0 0.0
        %703 = vmatprep.subr.mxu0 0.0
        %704 = vmatpush1.xpose.msra.mxu0 0.0
        %705 = vmatprep.subr.mxu0 0.0
        %706 = vmatpush1.xpose.msra.mxu0 0.0
        %707 = vmatprep.subr.mxu0 0.0
        %708 = vmatpush1.xpose.msra.mxu0 0.0
        %709 = vmatprep.subr.mxu0 0.0
        %710 = vmatpush1.xpose.msra.mxu0 0.0
        %711 = vmatprep.subr.mxu0 0.0
        %712 = vmatpush1.xpose.msra.mxu0 0.0
        %713 = vmatprep.subr.mxu0 0.0
        %714 = vmatpush1.xpose.msra.mxu0 0.0
        %715 = vmatprep.subr.mxu0 0.0
        %716 = vmatpush1.xpose.msra.mxu0 0.0
        %717 = vmatprep.subr.mxu0 0.0
        %718 = vmatpush1.xpose.msra.mxu0 0.0
        %719 = vmatprep.subr.mxu0 0.0
        %720 = vmatpush1.xpose.msra.mxu0 0.0
        %721 = vmatprep.subr.mxu0 0.0
        %722 = vmatpush1.xpose.msra.mxu0 0.0
        %723 = vmatprep.subr.mxu0 0.0
        %724 = vmatpush1.xpose.msra.mxu0 0.0
        %725 = vmatprep.subr.mxu0 0.0
        %726 = vmatpush1.xpose.msra.mxu0 %v693
        %727 = vmatprep.subr.mxu0 0.0
        %728 = vmatpush2.xpose.msra.mxu0 0.0
        %729 = vmatprep.subr.mxu0 0.0
        %730 = vmatpush2.xpose.msra.mxu0 0.0
        %731 = vmatprep.subr.mxu0 0.0
        %732 = vmatpush2.xpose.msra.mxu0 0.0
        %733 = vmatprep.subr.mxu0 0.0
        %734 = vmatpush2.xpose.msra.mxu0 0.0
        %735 = vmatprep.subr.mxu0 0.0
        %736 = vmatpush2.xpose.msra.mxu0 0.0
        %737 = vmatprep.subr.mxu0 0.0
        %738 = vmatpush2.xpose.msra.mxu0 0.0
        %739 = vmatprep.subr.mxu0 0.0
        %740 = vmatpush2.xpose.msra.mxu0 0.0
        %741 = vmatprep.subr.mxu0 0.0
        %742 = vmatpush2.xpose.msra.mxu0 0.0
        %743 = vmatprep.subr.mxu0 0.0
        %744 = vmatpush2.xpose.msra.mxu0 0.0
        %745 = vmatprep.subr.mxu0 0.0
        %746 = vmatpush2.xpose.msra.mxu0 0.0
        %747 = vmatprep.subr.mxu0 0.0
        %748 = vmatpush2.xpose.msra.mxu0 0.0
        %749 = vmatprep.subr.mxu0 0.0
        %750 = vmatpush2.xpose.msra.mxu0 0.0
        %751 = vmatprep.subr.mxu0 0.0
        %752 = vmatpush2.xpose.msra.mxu0 0.0
        %753 = vmatprep.subr.mxu0 0.0
        %754 = vmatpush2.xpose.msra.mxu0 0.0
        %755 = vmatprep.subr.mxu0 0.0
        %756 = vmatpush2.xpose.msra.mxu0 0.0
        %757 = vmatprep.subr.mxu0 0.0
        %758 = vmatpush2.xpose.msra.mxu0 0.0
        %759 = vmatprep.mubr.f32.mxu0 0.0
        %760 = vmatmul.mubr.f32.gmra.mxu0 %v690
        %v761 = vpop.f32.mrf.mxu0
        %v762 = vadd.f32 0.0, %v761
        %v763 = vpop.f32.mrf.mxu0
        %764 = vdwg.mxu0
        %v766 = vsel %vm384, %v365, 0
        %v769 = vsel %vm384, %v373, 0
        %771 = vmatprep.subr.mxu0 0.0
        %772 = vmatpush1.xpose.msra.mxu0 0.0
        %773 = vmatprep.subr.mxu0 0.0
        %774 = vmatpush1.xpose.msra.mxu0 0.0
        %775 = vmatprep.subr.mxu0 0.0
        %776 = vmatpush1.xpose.msra.mxu0 0.0
        %777 = vmatprep.subr.mxu0 0.0
        %778 = vmatpush1.xpose.msra.mxu0 0.0
        %779 = vmatprep.subr.mxu0 0.0
        %780 = vmatpush1.xpose.msra.mxu0 0.0
        %781 = vmatprep.subr.mxu0 0.0
        %782 = vmatpush1.xpose.msra.mxu0 0.0
        %783 = vmatprep.subr.mxu0 0.0
        %784 = vmatpush1.xpose.msra.mxu0 0.0
        %785 = vmatprep.subr.mxu0 0.0
        %786 = vmatpush1.xpose.msra.mxu0 0.0
        %787 = vmatprep.subr.mxu0 0.0
        %788 = vmatpush1.xpose.msra.mxu0 0.0
        %789 = vmatprep.subr.mxu0 0.0
        %790 = vmatpush1.xpose.msra.mxu0 0.0
        %791 = vmatprep.subr.mxu0 0.0
        %792 = vmatpush1.xpose.msra.mxu0 0.0
        %793 = vmatprep.subr.mxu0 0.0
        %794 = vmatpush1.xpose.msra.mxu0 0.0
        %795 = vmatprep.subr.mxu0 0.0
        %796 = vmatpush1.xpose.msra.mxu0 0.0
        %797 = vmatprep.subr.mxu0 0.0
        %798 = vmatpush1.xpose.msra.mxu0 0.0
        %799 = vmatprep.subr.mxu0 0.0
        %800 = vmatpush1.xpose.msra.mxu0 0.0
        %801 = vmatprep.subr.mxu0 0.0
        %802 = vmatpush1.xpose.msra.mxu0 %v769
        %803 = vmatprep.subr.mxu0 0.0
        %804 = vmatpush2.xpose.msra.mxu0 0.0
        %805 = vmatprep.subr.mxu0 0.0
        %806 = vmatpush2.xpose.msra.mxu0 0.0
        %807 = vmatprep.subr.mxu0 0.0
        %808 = vmatpush2.xpose.msra.mxu0 0.0
        %809 = vmatprep.subr.mxu0 0.0
        %810 = vmatpush2.xpose.msra.mxu0 0.0
        %811 = vmatprep.subr.mxu0 0.0
        %812 = vmatpush2.xpose.msra.mxu0 0.0
        %813 = vmatprep.subr.mxu0 0.0
        %814 = vmatpush2.xpose.msra.mxu0 0.0
        %815 = vmatprep.subr.mxu0 0.0
        %816 = vmatpush2.xpose.msra.mxu0 0.0
        %817 = vmatprep.subr.mxu0 0.0
        %818 = vmatpush2.xpose.msra.mxu0 0.0
        %819 = vmatprep.subr.mxu0 0.0
        %820 = vmatpush2.xpose.msra.mxu0 0.0
        %821 = vmatprep.subr.mxu0 0.0
        %822 = vmatpush2.xpose.msra.mxu0 0.0
        %823 = vmatprep.subr.mxu0 0.0
        %824 = vmatpush2.xpose.msra.mxu0 0.0
        %825 = vmatprep.subr.mxu0 0.0
        %826 = vmatpush2.xpose.msra.mxu0 0.0
        %827 = vmatprep.subr.mxu0 0.0
        %828 = vmatpush2.xpose.msra.mxu0 0.0
        %829 = vmatprep.subr.mxu0 0.0
        %830 = vmatpush2.xpose.msra.mxu0 0.0
        %831 = vmatprep.subr.mxu0 0.0
        %832 = vmatpush2.xpose.msra.mxu0 0.0
        %833 = vmatprep.subr.mxu0 0.0
        %834 = vmatpush2.xpose.msra.mxu0 0.0
        %835 = vmatprep.mubr.f32.mxu0 0.0
        %836 = vmatmul.mubr.f32.gmra.mxu0 %v766
        %v837 = vpop.f32.mrf.mxu0
        %v838 = vadd.f32 0.0, %v837
        %v839 = vpop.f32.mrf.mxu0
        %840 = vdwg.mxu0
        %v842 = vsel %vm384, %v366, 0
        %v845 = vsel %vm384, %v374, 0
        %847 = vmatprep.subr.mxu0 0.0
        %848 = vmatpush1.xpose.msra.mxu0 0.0
        %849 = vmatprep.subr.mxu0 0.0
        %850 = vmatpush1.xpose.msra.mxu0 0.0
        %851 = vmatprep.subr.mxu0 0.0
        %852 = vmatpush1.xpose.msra.mxu0 0.0
        %853 = vmatprep.subr.mxu0 0.0
        %854 = vmatpush1.xpose.msra.mxu0 0.0
        %855 = vmatprep.subr.mxu0 0.0
        %856 = vmatpush1.xpose.msra.mxu0 0.0
        %857 = vmatprep.subr.mxu0 0.0
        %858 = vmatpush1.xpose.msra.mxu0 0.0
        %859 = vmatprep.subr.mxu0 0.0
        %860 = vmatpush1.xpose.msra.mxu0 0.0
        %861 = vmatprep.subr.mxu0 0.0
        %862 = vmatpush1.xpose.msra.mxu0 0.0
        %863 = vmatprep.subr.mxu0 0.0
        %864 = vmatpush1.xpose.msra.mxu0 0.0
        %865 = vmatprep.subr.mxu0 0.0
        %866 = vmatpush1.xpose.msra.mxu0 0.0
        %867 = vmatprep.subr.mxu0 0.0
        %868 = vmatpush1.xpose.msra.mxu0 0.0
        %869 = vmatprep.subr.mxu0 0.0
        %870 = vmatpush1.xpose.msra.mxu0 0.0
        %871 = vmatprep.subr.mxu0 0.0
        %872 = vmatpush1.xpose.msra.mxu0 0.0
        %873 = vmatprep.subr.mxu0 0.0
        %874 = vmatpush1.xpose.msra.mxu0 0.0
        %875 = vmatprep.subr.mxu0 0.0
        %876 = vmatpush1.xpose.msra.mxu0 0.0
        %877 = vmatprep.subr.mxu0 0.0
        %878 = vmatpush1.xpose.msra.mxu0 %v845
        %879 = vmatprep.subr.mxu0 0.0
        %880 = vmatpush2.xpose.msra.mxu0 0.0
        %881 = vmatprep.subr.mxu0 0.0
        %882 = vmatpush2.xpose.msra.mxu0 0.0
        %883 = vmatprep.subr.mxu0 0.0
        %884 = vmatpush2.xpose.msra.mxu0 0.0
        %885 = vmatprep.subr.mxu0 0.0
        %886 = vmatpush2.xpose.msra.mxu0 0.0
        %887 = vmatprep.subr.mxu0 0.0
        %888 = vmatpush2.xpose.msra.mxu0 0.0
        %889 = vmatprep.subr.mxu0 0.0
        %890 = vmatpush2.xpose.msra.mxu0 0.0
        %891 = vmatprep.subr.mxu0 0.0
        %892 = vmatpush2.xpose.msra.mxu0 0.0
        %893 = vmatprep.subr.mxu0 0.0
        %894 = vmatpush2.xpose.msra.mxu0 0.0
        %895 = vmatprep.subr.mxu0 0.0
        %896 = vmatpush2.xpose.msra.mxu0 0.0
        %897 = vmatprep.subr.mxu0 0.0
        %898 = vmatpush2.xpose.msra.mxu0 0.0
        %899 = vmatprep.subr.mxu0 0.0
        %900 = vmatpush2.xpose.msra.mxu0 0.0
        %901 = vmatprep.subr.mxu0 0.0
        %902 = vmatpush2.xpose.msra.mxu0 0.0
        %903 = vmatprep.subr.mxu0 0.0
        %904 = vmatpush2.xpose.msra.mxu0 0.0
        %905 = vmatprep.subr.mxu0 0.0
        %906 = vmatpush2.xpose.msra.mxu0 0.0
        %907 = vmatprep.subr.mxu0 0.0
        %908 = vmatpush2.xpose.msra.mxu0 0.0
        %909 = vmatprep.subr.mxu0 0.0
        %910 = vmatpush2.xpose.msra.mxu0 0.0
        %911 = vmatprep.mubr.f32.mxu0 0.0
        %912 = vmatmul.mubr.f32.gmra.mxu0 %v842
        %v913 = vpop.f32.mrf.mxu0
        %v914 = vadd.f32 0.0, %v913
        %v915 = vpop.f32.mrf.mxu0
        %916 = vdwg.mxu0
        %v918 = vsel %vm384, %v367, 0
        %v921 = vsel %vm384, %v375, 0
        %923 = vmatprep.subr.mxu0 0.0
        %924 = vmatpush1.xpose.msra.mxu0 0.0
        %925 = vmatprep.subr.mxu0 0.0
        %926 = vmatpush1.xpose.msra.mxu0 0.0
        %927 = vmatprep.subr.mxu0 0.0
        %928 = vmatpush1.xpose.msra.mxu0 0.0
        %929 = vmatprep.subr.mxu0 0.0
        %930 = vmatpush1.xpose.msra.mxu0 0.0
        %931 = vmatprep.subr.mxu0 0.0
        %932 = vmatpush1.xpose.msra.mxu0 0.0
        %933 = vmatprep.subr.mxu0 0.0
        %934 = vmatpush1.xpose.msra.mxu0 0.0
        %935 = vmatprep.subr.mxu0 0.0
        %936 = vmatpush1.xpose.msra.mxu0 0.0
        %937 = vmatprep.subr.mxu0 0.0
        %938 = vmatpush1.xpose.msra.mxu0 0.0
        %939 = vmatprep.subr.mxu0 0.0
        %940 = vmatpush1.xpose.msra.mxu0 0.0
        %941 = vmatprep.subr.mxu0 0.0
        %942 = vmatpush1.xpose.msra.mxu0 0.0
        %943 = vmatprep.subr.mxu0 0.0
        %944 = vmatpush1.xpose.msra.mxu0 0.0
        %945 = vmatprep.subr.mxu0 0.0
        %946 = vmatpush1.xpose.msra.mxu0 0.0
        %947 = vmatprep.subr.mxu0 0.0
        %948 = vmatpush1.xpose.msra.mxu0 0.0
        %949 = vmatprep.subr.mxu0 0.0
        %950 = vmatpush1.xpose.msra.mxu0 0.0
        %951 = vmatprep.subr.mxu0 0.0
        %952 = vmatpush1.xpose.msra.mxu0 0.0
        %953 = vmatprep.subr.mxu0 0.0
        %954 = vmatpush1.xpose.msra.mxu0 %v921
        %955 = vmatprep.subr.mxu0 0.0
        %956 = vmatpush2.xpose.msra.mxu0 0.0
        %957 = vmatprep.subr.mxu0 0.0
        %958 = vmatpush2.xpose.msra.mxu0 0.0
        %959 = vmatprep.subr.mxu0 0.0
        %960 = vmatpush2.xpose.msra.mxu0 0.0
        %961 = vmatprep.subr.mxu0 0.0
        %962 = vmatpush2.xpose.msra.mxu0 0.0
        %963 = vmatprep.subr.mxu0 0.0
        %964 = vmatpush2.xpose.msra.mxu0 0.0
        %965 = vmatprep.subr.mxu0 0.0
        %966 = vmatpush2.xpose.msra.mxu0 0.0
        %967 = vmatprep.subr.mxu0 0.0
        %968 = vmatpush2.xpose.msra.mxu0 0.0
        %969 = vmatprep.subr.mxu0 0.0
        %970 = vmatpush2.xpose.msra.mxu0 0.0
        %971 = vmatprep.subr.mxu0 0.0
        %972 = vmatpush2.xpose.msra.mxu0 0.0
        %973 = vmatprep.subr.mxu0 0.0
        %974 = vmatpush2.xpose.msra.mxu0 0.0
        %975 = vmatprep.subr.mxu0 0.0
        %976 = vmatpush2.xpose.msra.mxu0 0.0
        %977 = vmatprep.subr.mxu0 0.0
        %978 = vmatpush2.xpose.msra.mxu0 0.0
        %979 = vmatprep.subr.mxu0 0.0
        %980 = vmatpush2.xpose.msra.mxu0 0.0
        %981 = vmatprep.subr.mxu0 0.0
        %982 = vmatpush2.xpose.msra.mxu0 0.0
        %983 = vmatprep.subr.mxu0 0.0
        %984 = vmatpush2.xpose.msra.mxu0 0.0
        %985 = vmatprep.subr.mxu0 0.0
        %986 = vmatpush2.xpose.msra.mxu0 0.0
        %987 = vmatprep.mubr.f32.mxu0 0.0
        %988 = vmatmul.mubr.f32.gmra.mxu0 %v918
        %v989 = vpop.f32.mrf.mxu0
        %v990 = vadd.f32 0.0, %v989
        %v991 = vpop.f32.mrf.mxu0
        %992 = vdwg.mxu0
        %v993 = vmul.f32 %v458, 0.25
        %v994 = vmul.f32 %v534, 0.25
        %v995 = vmul.f32 %v610, 0.25
        %v996 = vmul.f32 %v686, 0.25
        %v997 = vmul.f32 %v762, 0.25
        %v998 = vmul.f32 %v838, 0.25
        %v999 = vmul.f32 %v914, 0.25
        %v1000 = vmul.f32 %v990, 0.25
        %v1001 = vld [vmem:[%s316] sm:$0xff]
        %v1002 = vadd.f32 %v993, %v1001
        %v1003 = vadd.f32 %v994, %v1001
        %v1004 = vadd.f32 %v995, %v1001
        %v1005 = vadd.f32 %v996, %v1001
        %v1006 = vadd.f32 %v997, %v1001
        %v1007 = vadd.f32 %v998, %v1001
        %v1008 = vadd.f32 %v999, %v1001
        %v1009 = vadd.f32 %v1000, %v1001
        %vm1010 = vcmask 64512
        %v1011 = vsel %vm1010, %v1002, -inf
        %1012 = vmax.xlane.f32.xlu0 %v1011
        %v1013 = vpop.xlane.xlu0 %1012
        %v1014 = vsel %vm1010, %v1003, -inf
        %1015 = vmax.xlane.f32.xlu0 %v1014
        %v1016 = vpop.xlane.xlu0 %1015
        %v1017 = vsel %vm1010, %v1004, -inf
        %1018 = vmax.xlane.f32.xlu0 %v1017
        %v1019 = vpop.xlane.xlu0 %1018
        %v1020 = vsel %vm1010, %v1005, -inf
        %1021 = vmax.xlane.f32.xlu0 %v1020
        %v1022 = vpop.xlane.xlu0 %1021
        %v1023 = vsel %vm1010, %v1006, -inf
        %1024 = vmax.xlane.f32.xlu0 %v1023
        %v1025 = vpop.xlane.xlu0 %1024
        %v1026 = vsel %vm1010, %v1007, -inf
        %1027 = vmax.xlane.f32.xlu0 %v1026
        %v1028 = vpop.xlane.xlu0 %1027
        %v1029 = vsel %vm1010, %v1008, -inf
        %1030 = vmax.xlane.f32.xlu0 %v1029
        %v1031 = vpop.xlane.xlu0 %1030
        %v1032 = vsel %vm1010, %v1009, -inf
        %1033 = vmax.xlane.f32.xlu0 %v1032
        %v1034 = vpop.xlane.xlu0 %1033
        %v1035 = vsub.f32 %v1002, %v1013
        %v1036 = vsub.f32 %v1003, %v1016
        %v1037 = vsub.f32 %v1004, %v1019
        %v1038 = vsub.f32 %v1005, %v1022
        %v1039 = vsub.f32 %v1006, %v1025
        %v1040 = vsub.f32 %v1007, %v1028
        %v1041 = vsub.f32 %v1008, %v1031
        %v1042 = vsub.f32 %v1009, %v1034
        %v1043 = vmul.f32 %v1035, 1.442695
        %v1044 = vpow.pop %v1043
        %v1045 = vmul.f32 %v1036, 1.442695
        %v1046 = vpow.pop %v1045
        %v1047 = vmul.f32 %v1037, 1.442695
        %v1048 = vpow.pop %v1047
        %v1049 = vmul.f32 %v1038, 1.442695
        %v1050 = vpow.pop %v1049
        %v1051 = vmul.f32 %v1039, 1.442695
        %v1052 = vpow.pop %v1051
        %v1053 = vmul.f32 %v1040, 1.442695
        %v1054 = vpow.pop %v1053
        %v1055 = vmul.f32 %v1041, 1.442695
        %v1056 = vpow.pop %v1055
        %v1057 = vmul.f32 %v1042, 1.442695
        %v1058 = vpow.pop %v1057
        %v1059 = vsel %vm1010, %v1044, 0.0
        %1060 = vadd.xlane.f32.xlu0 %v1059
        %v1061 = vpop.xlane.xlu0 %1060
        %v1062 = vsel %vm1010, %v1046, 0.0
        %1063 = vadd.xlane.f32.xlu0 %v1062
        %v1064 = vpop.xlane.xlu0 %1063
        %v1065 = vsel %vm1010, %v1048, 0.0
        %1066 = vadd.xlane.f32.xlu0 %v1065
        %v1067 = vpop.xlane.xlu0 %1066
        %v1068 = vsel %vm1010, %v1050, 0.0
        %1069 = vadd.xlane.f32.xlu0 %v1068
        %v1070 = vpop.xlane.xlu0 %1069
        %v1071 = vsel %vm1010, %v1052, 0.0
        %1072 = vadd.xlane.f32.xlu0 %v1071
        %v1073 = vpop.xlane.xlu0 %1072
        %v1074 = vsel %vm1010, %v1054, 0.0
        %1075 = vadd.xlane.f32.xlu0 %v1074
        %v1076 = vpop.xlane.xlu0 %1075
        %v1077 = vsel %vm1010, %v1056, 0.0
        %1078 = vadd.xlane.f32.xlu0 %v1077
        %v1079 = vpop.xlane.xlu0 %1078
        %v1080 = vsel %vm1010, %v1058, 0.0
        %1081 = vadd.xlane.f32.xlu0 %v1080
        %v1082 = vpop.xlane.xlu0 %1081
        %v1083 = vrcp.pop %v1061
        %v1084 = vmul.f32 1.0, %v1083
        %v1085 = vrcp.pop %v1064
        %v1086 = vmul.f32 1.0, %v1085
        %v1087 = vrcp.pop %v1067
        %v1088 = vmul.f32 1.0, %v1087
        %v1089 = vrcp.pop %v1070
        %v1090 = vmul.f32 1.0, %v1089
        %v1091 = vrcp.pop %v1073
        %v1092 = vmul.f32 1.0, %v1091
        %v1093 = vrcp.pop %v1076
        %v1094 = vmul.f32 1.0, %v1093
        %v1095 = vrcp.pop %v1079
        %v1096 = vmul.f32 1.0, %v1095
        %v1097 = vrcp.pop %v1082
        %v1098 = vmul.f32 1.0, %v1097
        %v1099 = vmul.f32 %v1044, %v1084
        %v1100 = vmul.f32 %v1046, %v1086
        %v1101 = vmul.f32 %v1048, %v1088
        %v1102 = vmul.f32 %v1050, %v1090
        %v1103 = vmul.f32 %v1052, %v1092
        %v1104 = vmul.f32 %v1054, %v1094
        %v1105 = vmul.f32 %v1056, %v1096
        %v1106 = vmul.f32 %v1058, %v1098
        %v1108 = vsel %vm1010, %v1099, 0
        %1110 = vmatprep.subr.mxu0 0.0
        %1111 = vmatpush1.msra.mxu0 0.0
        %1112 = vmatprep.subr.mxu0 0.0
        %1113 = vmatpush1.msra.mxu0 0.0
        %1114 = vmatprep.subr.mxu0 0.0
        %1115 = vmatpush1.msra.mxu0 0.0
        %1116 = vmatprep.subr.mxu0 0.0
        %1117 = vmatpush1.msra.mxu0 0.0
        %1118 = vmatprep.subr.mxu0 0.0
        %1119 = vmatpush1.msra.mxu0 0.0
        %1120 = vmatprep.subr.mxu0 0.0
        %1121 = vmatpush1.msra.mxu0 0.0
        %1122 = vmatprep.subr.mxu0 0.0
        %1123 = vmatpush1.msra.mxu0 0.0
        %1124 = vmatprep.subr.mxu0 0.0
        %1125 = vmatpush1.msra.mxu0 0.0
        %1126 = vmatprep.subr.mxu0 0.0
        %1127 = vmatpush1.msra.mxu0 0.0
        %1128 = vmatprep.subr.mxu0 0.0
        %1129 = vmatpush1.msra.mxu0 0.0
        %1130 = vmatprep.subr.mxu0 0.0
        %1131 = vmatpush1.msra.mxu0 0.0
        %1132 = vmatprep.subr.mxu0 0.0
        %1133 = vmatpush1.msra.mxu0 0.0
        %1134 = vmatprep.subr.mxu0 0.0
        %1135 = vmatpush1.msra.mxu0 0.0
        %1136 = vmatprep.subr.mxu0 0.0
        %1137 = vmatpush1.msra.mxu0 0.0
        %1138 = vmatprep.subr.mxu0 0.0
        %1139 = vmatpush1.msra.mxu0 0.0
        %1140 = vmatprep.subr.mxu0 0.0
        %1141 = vmatpush1.msra.mxu0 %v376
        %1142 = vmatprep.subr.mxu0 0.0
        %1143 = vmatpush2.msra.mxu0 0.0
        %1144 = vmatprep.subr.mxu0 0.0
        %1145 = vmatpush2.msra.mxu0 0.0
        %1146 = vmatprep.subr.mxu0 0.0
        %1147 = vmatpush2.msra.mxu0 0.0
        %1148 = vmatprep.subr.mxu0 0.0
        %1149 = vmatpush2.msra.mxu0 0.0
        %1150 = vmatprep.subr.mxu0 0.0
        %1151 = vmatpush2.msra.mxu0 0.0
        %1152 = vmatprep.subr.mxu0 0.0
        %1153 = vmatpush2.msra.mxu0 0.0
        %1154 = vmatprep.subr.mxu0 0.0
        %1155 = vmatpush2.msra.mxu0 0.0
        %1156 = vmatprep.subr.mxu0 0.0
        %1157 = vmatpush2.msra.mxu0 0.0
        %1158 = vmatprep.subr.mxu0 0.0
        %1159 = vmatpush2.msra.mxu0 0.0
        %1160 = vmatprep.subr.mxu0 0.0
        %1161 = vmatpush2.msra.mxu0 0.0
        %1162 = vmatprep.subr.mxu0 0.0
        %1163 = vmatpush2.msra.mxu0 0.0
        %1164 = vmatprep.subr.mxu0 0.0
        %1165 = vmatpush2.msra.mxu0 0.0
        %1166 = vmatprep.subr.mxu0 0.0
        %1167 = vmatpush2.msra.mxu0 0.0
        %1168 = vmatprep.subr.mxu0 0.0
        %1169 = vmatpush2.msra.mxu0 0.0
        %1170 = vmatprep.subr.mxu0 0.0
        %1171 = vmatpush2.msra.mxu0 0.0
        %1172 = vmatprep.subr.mxu0 0.0
        %1173 = vmatpush2.msra.mxu0 0.0
        %1174 = vmatprep.mubr.f32.mxu0 0.0
        %1175 = vmatmul.mubr.f32.gmra.mxu0 %v1108
        %v1176 = vpop.f32.mrf.mxu0
        %v1177 = vadd.f32 0.0, %v1176
        %v1178 = vpop.f32.mrf.mxu0
        %1179 = vdwg.mxu0
        %v1181 = vsel %vm1010, %v1100, 0
        %1183 = vmatprep.subr.mxu0 0.0
        %1184 = vmatpush1.msra.mxu0 0.0
        %1185 = vmatprep.subr.mxu0 0.0
        %1186 = vmatpush1.msra.mxu0 0.0
        %1187 = vmatprep.subr.mxu0 0.0
        %1188 = vmatpush1.msra.mxu0 0.0
        %1189 = vmatprep.subr.mxu0 0.0
        %1190 = vmatpush1.msra.mxu0 0.0
        %1191 = vmatprep.subr.mxu0 0.0
        %1192 = vmatpush1.msra.mxu0 0.0
        %1193 = vmatprep.subr.mxu0 0.0
        %1194 = vmatpush1.msra.mxu0 0.0
        %1195 = vmatprep.subr.mxu0 0.0
        %1196 = vmatpush1.msra.mxu0 0.0
        %1197 = vmatprep.subr.mxu0 0.0
        %1198 = vmatpush1.msra.mxu0 0.0
        %1199 = vmatprep.subr.mxu0 0.0
        %1200 = vmatpush1.msra.mxu0 0.0
        %1201 = vmatprep.subr.mxu0 0.0
        %1202 = vmatpush1.msra.mxu0 0.0
        %1203 = vmatprep.subr.mxu0 0.0
        %1204 = vmatpush1.msra.mxu0 0.0
        %1205 = vmatprep.subr.mxu0 0.0
        %1206 = vmatpush1.msra.mxu0 0.0
        %1207 = vmatprep.subr.mxu0 0.0
        %1208 = vmatpush1.msra.mxu0 0.0
        %1209 = vmatprep.subr.mxu0 0.0
        %1210 = vmatpush1.msra.mxu0 0.0
        %1211 = vmatprep.subr.mxu0 0.0
        %1212 = vmatpush1.msra.mxu0 0.0
        %1213 = vmatprep.subr.mxu0 0.0
        %1214 = vmatpush1.msra.mxu0 %v377
        %1215 = vmatprep.subr.mxu0 0.0
        %1216 = vmatpush2.msra.mxu0 0.0
        %1217 = vmatprep.subr.mxu0 0.0
        %1218 = vmatpush2.msra.mxu0 0.0
        %1219 = vmatprep.subr.mxu0 0.0
        %1220 = vmatpush2.msra.mxu0 0.0
        %1221 = vmatprep.subr.mxu0 0.0
        %1222 = vmatpush2.msra.mxu0 0.0
        %1223 = vmatprep.subr.mxu0 0.0
        %1224 = vmatpush2.msra.mxu0 0.0
        %1225 = vmatprep.subr.mxu0 0.0
        %1226 = vmatpush2.msra.mxu0 0.0
        %1227 = vmatprep.subr.mxu0 0.0
        %1228 = vmatpush2.msra.mxu0 0.0
        %1229 = vmatprep.subr.mxu0 0.0
        %1230 = vmatpush2.msra.mxu0 0.0
        %1231 = vmatprep.subr.mxu0 0.0
        %1232 = vmatpush2.msra.mxu0 0.0
        %1233 = vmatprep.subr.mxu0 0.0
        %1234 = vmatpush2.msra.mxu0 0.0
        %1235 = vmatprep.subr.mxu0 0.0
        %1236 = vmatpush2.msra.mxu0 0.0
        %1237 = vmatprep.subr.mxu0 0.0
        %1238 = vmatpush2.msra.mxu0 0.0
        %1239 = vmatprep.subr.mxu0 0.0
        %1240 = vmatpush2.msra.mxu0 0.0
        %1241 = vmatprep.subr.mxu0 0.0
        %1242 = vmatpush2.msra.mxu0 0.0
        %1243 = vmatprep.subr.mxu0 0.0
        %1244 = vmatpush2.msra.mxu0 0.0
        %1245 = vmatprep.subr.mxu0 0.0
        %1246 = vmatpush2.msra.mxu0 0.0
        %1247 = vmatprep.mubr.f32.mxu0 0.0
        %1248 = vmatmul.mubr.f32.gmra.mxu0 %v1181
        %v1249 = vpop.f32.mrf.mxu0
        %v1250 = vadd.f32 0.0, %v1249
        %v1251 = vpop.f32.mrf.mxu0
        %1252 = vdwg.mxu0
        %v1254 = vsel %vm1010, %v1101, 0
        %1256 = vmatprep.subr.mxu0 0.0
        %1257 = vmatpush1.msra.mxu0 0.0
        %1258 = vmatprep.subr.mxu0 0.0
        %1259 = vmatpush1.msra.mxu0 0.0
        %1260 = vmatprep.subr.mxu0 0.0
        %1261 = vmatpush1.msra.mxu0 0.0
        %1262 = vmatprep.subr.mxu0 0.0
        %1263 = vmatpush1.msra.mxu0 0.0
        %1264 = vmatprep.subr.mxu0 0.0
        %1265 = vmatpush1.msra.mxu0 0.0
        %1266 = vmatprep.subr.mxu0 0.0
        %1267 = vmatpush1.msra.mxu0 0.0
        %1268 = vmatprep.subr.mxu0 0.0
        %1269 = vmatpush1.msra.mxu0 0.0
        %1270 = vmatprep.subr.mxu0 0.0
        %1271 = vmatpush1.msra.mxu0 0.0
        %1272 = vmatprep.subr.mxu0 0.0
        %1273 = vmatpush1.msra.mxu0 0.0
        %1274 = vmatprep.subr.mxu0 0.0
        %1275 = vmatpush1.msra.mxu0 0.0
        %1276 = vmatprep.subr.mxu0 0.0
        %1277 = vmatpush1.msra.mxu0 0.0
        %1278 = vmatprep.subr.mxu0 0.0
        %1279 = vmatpush1.msra.mxu0 0.0
        %1280 = vmatprep.subr.mxu0 0.0
        %1281 = vmatpush1.msra.mxu0 0.0
        %1282 = vmatprep.subr.mxu0 0.0
        %1283 = vmatpush1.msra.mxu0 0.0
        %1284 = vmatprep.subr.mxu0 0.0
        %1285 = vmatpush1.msra.mxu0 0.0
        %1286 = vmatprep.subr.mxu0 0.0
        %1287 = vmatpush1.msra.mxu0 %v378
        %1288 = vmatprep.subr.mxu0 0.0
        %1289 = vmatpush2.msra.mxu0 0.0
        %1290 = vmatprep.subr.mxu0 0.0
        %1291 = vmatpush2.msra.mxu0 0.0
        %1292 = vmatprep.subr.mxu0 0.0
        %1293 = vmatpush2.msra.mxu0 0.0
        %1294 = vmatprep.subr.mxu0 0.0
        %1295 = vmatpush2.msra.mxu0 0.0
        %1296 = vmatprep.subr.mxu0 0.0
        %1297 = vmatpush2.msra.mxu0 0.0
        %1298 = vmatprep.subr.mxu0 0.0
        %1299 = vmatpush2.msra.mxu0 0.0
        %1300 = vmatprep.subr.mxu0 0.0
        %1301 = vmatpush2.msra.mxu0 0.0
        %1302 = vmatprep.subr.mxu0 0.0
        %1303 = vmatpush2.msra.mxu0 0.0
        %1304 = vmatprep.subr.mxu0 0.0
        %1305 = vmatpush2.msra.mxu0 0.0
        %1306 = vmatprep.subr.mxu0 0.0
        %1307 = vmatpush2.msra.mxu0 0.0
        %1308 = vmatprep.subr.mxu0 0.0
        %1309 = vmatpush2.msra.mxu0 0.0
        %1310 = vmatprep.subr.mxu0 0.0
        %1311 = vmatpush2.msra.mxu0 0.0
        %1312 = vmatprep.subr.mxu0 0.0
        %1313 = vmatpush2.msra.mxu0 0.0
        %1314 = vmatprep.subr.mxu0 0.0
        %1315 = vmatpush2.msra.mxu0 0.0
        %1316 = vmatprep.subr.mxu0 0.0
        %1317 = vmatpush2.msra.mxu0 0.0
        %1318 = vmatprep.subr.mxu0 0.0
        %1319 = vmatpush2.msra.mxu0 0.0
        %1320 = vmatprep.mubr.f32.mxu0 0.0
        %1321 = vmatmul.mubr.f32.gmra.mxu0 %v1254
        %v1322 = vpop.f32.mrf.mxu0
        %v1323 = vadd.f32 0.0, %v1322
        %v1324 = vpop.f32.mrf.mxu0
        %1325 = vdwg.mxu0
        %v1327 = vsel %vm1010, %v1102, 0
        %1329 = vmatprep.subr.mxu0 0.0
        %1330 = vmatpush1.msra.mxu0 0.0
        %1331 = vmatprep.subr.mxu0 0.0
        %1332 = vmatpush1.msra.mxu0 0.0
        %1333 = vmatprep.subr.mxu0 0.0
        %1334 = vmatpush1.msra.mxu0 0.0
        %1335 = vmatprep.subr.mxu0 0.0
        %1336 = vmatpush1.msra.mxu0 0.0
        %1337 = vmatprep.subr.mxu0 0.0
        %1338 = vmatpush1.msra.mxu0 0.0
        %1339 = vmatprep.subr.mxu0 0.0
        %1340 = vmatpush1.msra.mxu0 0.0
        %1341 = vmatprep.subr.mxu0 0.0
        %1342 = vmatpush1.msra.mxu0 0.0
        %1343 = vmatprep.subr.mxu0 0.0
        %1344 = vmatpush1.msra.mxu0 0.0
        %1345 = vmatprep.subr.mxu0 0.0
        %1346 = vmatpush1.msra.mxu0 0.0
        %1347 = vmatprep.subr.mxu0 0.0
        %1348 = vmatpush1.msra.mxu0 0.0
        %1349 = vmatprep.subr.mxu0 0.0
        %1350 = vmatpush1.msra.mxu0 0.0
        %1351 = vmatprep.subr.mxu0 0.0
        %1352 = vmatpush1.msra.mxu0 0.0
        %1353 = vmatprep.subr.mxu0 0.0
        %1354 = vmatpush1.msra.mxu0 0.0
        %1355 = vmatprep.subr.mxu0 0.0
        %1356 = vmatpush1.msra.mxu0 0.0
        %1357 = vmatprep.subr.mxu0 0.0
        %1358 = vmatpush1.msra.mxu0 0.0
        %1359 = vmatprep.subr.mxu0 0.0
        %1360 = vmatpush1.msra.mxu0 %v379
        %1361 = vmatprep.subr.mxu0 0.0
        %1362 = vmatpush2.msra.mxu0 0.0
        %1363 = vmatprep.subr.mxu0 0.0
        %1364 = vmatpush2.msra.mxu0 0.0
        %1365 = vmatprep.subr.mxu0 0.0
        %1366 = vmatpush2.msra.mxu0 0.0
        %1367 = vmatprep.subr.mxu0 0.0
        %1368 = vmatpush2.msra.mxu0 0.0
        %1369 = vmatprep.subr.mxu0 0.0
        %1370 = vmatpush2.msra.mxu0 0.0
        %1371 = vmatprep.subr.mxu0 0.0
        %1372 = vmatpush2.msra.mxu0 0.0
        %1373 = vmatprep.subr.mxu0 0.0
        %1374 = vmatpush2.msra.mxu0 0.0
        %1375 = vmatprep.subr.mxu0 0.0
        %1376 = vmatpush2.msra.mxu0 0.0
        %1377 = vmatprep.subr.mxu0 0.0
        %1378 = vmatpush2.msra.mxu0 0.0
        %1379 = vmatprep.subr.mxu0 0.0
        %1380 = vmatpush2.msra.mxu0 0.0
        %1381 = vmatprep.subr.mxu0 0.0
        %1382 = vmatpush2.msra.mxu0 0.0
        %1383 = vmatprep.subr.mxu0 0.0
        %1384 = vmatpush2.msra.mxu0 0.0
        %1385 = vmatprep.subr.mxu0 0.0
        %1386 = vmatpush2.msra.mxu0 0.0
        %1387 = vmatprep.subr.mxu0 0.0
        %1388 = vmatpush2.msra.mxu0 0.0
        %1389 = vmatprep.subr.mxu0 0.0
        %1390 = vmatpush2.msra.mxu0 0.0
        %1391 = vmatprep.subr.mxu0 0.0
        %1392 = vmatpush2.msra.mxu0 0.0
        %1393 = vmatprep.mubr.f32.mxu0 0.0
        %1394 = vmatmul.mubr.f32.gmra.mxu0 %v1327
        %v1395 = vpop.f32.mrf.mxu0
        %v1396 = vadd.f32 0.0, %v1395
        %v1397 = vpop.f32.mrf.mxu0
        %1398 = vdwg.mxu0
        %v1400 = vsel %vm1010, %v1103, 0
        %1402 = vmatprep.subr.mxu0 0.0
        %1403 = vmatpush1.msra.mxu0 0.0
        %1404 = vmatprep.subr.mxu0 0.0
        %1405 = vmatpush1.msra.mxu0 0.0
        %1406 = vmatprep.subr.mxu0 0.0
        %1407 = vmatpush1.msra.mxu0 0.0
        %1408 = vmatprep.subr.mxu0 0.0
        %1409 = vmatpush1.msra.mxu0 0.0
        %1410 = vmatprep.subr.mxu0 0.0
        %1411 = vmatpush1.msra.mxu0 0.0
        %1412 = vmatprep.subr.mxu0 0.0
        %1413 = vmatpush1.msra.mxu0 0.0
        %1414 = vmatprep.subr.mxu0 0.0
        %1415 = vmatpush1.msra.mxu0 0.0
        %1416 = vmatprep.subr.mxu0 0.0
        %1417 = vmatpush1.msra.mxu0 0.0
        %1418 = vmatprep.subr.mxu0 0.0
        %1419 = vmatpush1.msra.mxu0 0.0
        %1420 = vmatprep.subr.mxu0 0.0
        %1421 = vmatpush1.msra.mxu0 0.0
        %1422 = vmatprep.subr.mxu0 0.0
        %1423 = vmatpush1.msra.mxu0 0.0
        %1424 = vmatprep.subr.mxu0 0.0
        %1425 = vmatpush1.msra.mxu0 0.0
        %1426 = vmatprep.subr.mxu0 0.0
        %1427 = vmatpush1.msra.mxu0 0.0
        %1428 = vmatprep.subr.mxu0 0.0
        %1429 = vmatpush1.msra.mxu0 0.0
        %1430 = vmatprep.subr.mxu0 0.0
        %1431 = vmatpush1.msra.mxu0 0.0
        %1432 = vmatprep.subr.mxu0 0.0
        %1433 = vmatpush1.msra.mxu0 %v380
        %1434 = vmatprep.subr.mxu0 0.0
        %1435 = vmatpush2.msra.mxu0 0.0
        %1436 = vmatprep.subr.mxu0 0.0
        %1437 = vmatpush2.msra.mxu0 0.0
        %1438 = vmatprep.subr.mxu0 0.0
        %1439 = vmatpush2.msra.mxu0 0.0
        %1440 = vmatprep.subr.mxu0 0.0
        %1441 = vmatpush2.msra.mxu0 0.0
        %1442 = vmatprep.subr.mxu0 0.0
        %1443 = vmatpush2.msra.mxu0 0.0
        %1444 = vmatprep.subr.mxu0 0.0
        %1445 = vmatpush2.msra.mxu0 0.0
        %1446 = vmatprep.subr.mxu0 0.0
        %1447 = vmatpush2.msra.mxu0 0.0
        %1448 = vmatprep.subr.mxu0 0.0
        %1449 = vmatpush2.msra.mxu0 0.0
        %1450 = vmatprep.subr.mxu0 0.0
        %1451 = vmatpush2.msra.mxu0 0.0
        %1452 = vmatprep.subr.mxu0 0.0
        %1453 = vmatpush2.msra.mxu0 0.0
        %1454 = vmatprep.subr.mxu0 0.0
        %1455 = vmatpush2.msra.mxu0 0.0
        %1456 = vmatprep.subr.mxu0 0.0
        %1457 = vmatpush2.msra.mxu0 0.0
        %1458 = vmatprep.subr.mxu0 0.0
        %1459 = vmatpush2.msra.mxu0 0.0
        %1460 = vmatprep.subr.mxu0 0.0
        %1461 = vmatpush2.msra.mxu0 0.0
        %1462 = vmatprep.subr.mxu0 0.0
        %1463 = vmatpush2.msra.mxu0 0.0
        %1464 = vmatprep.subr.mxu0 0.0
        %1465 = vmatpush2.msra.mxu0 0.0
        %1466 = vmatprep.mubr.f32.mxu0 0.0
        %1467 = vmatmul.mubr.f32.gmra.mxu0 %v1400
        %v1468 = vpop.f32.mrf.mxu0
        %v1469 = vadd.f32 0.0, %v1468
        %v1470 = vpop.f32.mrf.mxu0
        %1471 = vdwg.mxu0
        %v1473 = vsel %vm1010, %v1104, 0
        %1475 = vmatprep.subr.mxu0 0.0
        %1476 = vmatpush1.msra.mxu0 0.0
        %1477 = vmatprep.subr.mxu0 0.0
        %1478 = vmatpush1.msra.mxu0 0.0
        %1479 = vmatprep.subr.mxu0 0.0
        %1480 = vmatpush1.msra.mxu0 0.0
        %1481 = vmatprep.subr.mxu0 0.0
        %1482 = vmatpush1.msra.mxu0 0.0
        %1483 = vmatprep.subr.mxu0 0.0
        %1484 = vmatpush1.msra.mxu0 0.0
        %1485 = vmatprep.subr.mxu0 0.0
        %1486 = vmatpush1.msra.mxu0 0.0
        %1487 = vmatprep.subr.mxu0 0.0
        %1488 = vmatpush1.msra.mxu0 0.0
        %1489 = vmatprep.subr.mxu0 0.0
        %1490 = vmatpush1.msra.mxu0 0.0
        %1491 = vmatprep.subr.mxu0 0.0
        %1492 = vmatpush1.msra.mxu0 0.0
        %1493 = vmatprep.subr.mxu0 0.0
        %1494 = vmatpush1.msra.mxu0 0.0
        %1495 = vmatprep.subr.mxu0 0.0
        %1496 = vmatpush1.msra.mxu0 0.0
        %1497 = vmatprep.subr.mxu0 0.0
        %1498 = vmatpush1.msra.mxu0 0.0
        %1499 = vmatprep.subr.mxu0 0.0
        %1500 = vmatpush1.msra.mxu0 0.0
        %1501 = vmatprep.subr.mxu0 0.0
        %1502 = vmatpush1.msra.mxu0 0.0
        %1503 = vmatprep.subr.mxu0 0.0
        %1504 = vmatpush1.msra.mxu0 0.0
        %1505 = vmatprep.subr.mxu0 0.0
        %1506 = vmatpush1.msra.mxu0 %v381
        %1507 = vmatprep.subr.mxu0 0.0
        %1508 = vmatpush2.msra.mxu0 0.0
        %1509 = vmatprep.subr.mxu0 0.0
        %1510 = vmatpush2.msra.mxu0 0.0
        %1511 = vmatprep.subr.mxu0 0.0
        %1512 = vmatpush2.msra.mxu0 0.0
        %1513 = vmatprep.subr.mxu0 0.0
        %1514 = vmatpush2.msra.mxu0 0.0
        %1515 = vmatprep.subr.mxu0 0.0
        %1516 = vmatpush2.msra.mxu0 0.0
        %1517 = vmatprep.subr.mxu0 0.0
        %1518 = vmatpush2.msra.mxu0 0.0
        %1519 = vmatprep.subr.mxu0 0.0
        %1520 = vmatpush2.msra.mxu0 0.0
        %1521 = vmatprep.subr.mxu0 0.0
        %1522 = vmatpush2.msra.mxu0 0.0
        %1523 = vmatprep.subr.mxu0 0.0
        %1524 = vmatpush2.msra.mxu0 0.0
        %1525 = vmatprep.subr.mxu0 0.0
        %1526 = vmatpush2.msra.mxu0 0.0
        %1527 = vmatprep.subr.mxu0 0.0
        %1528 = vmatpush2.msra.mxu0 0.0
        %1529 = vmatprep.subr.mxu0 0.0
        %1530 = vmatpush2.msra.mxu0 0.0
        %1531 = vmatprep.subr.mxu0 0.0
        %1532 = vmatpush2.msra.mxu0 0.0
        %1533 = vmatprep.subr.mxu0 0.0
        %1534 = vmatpush2.msra.mxu0 0.0
        %1535 = vmatprep.subr.mxu0 0.0
        %1536 = vmatpush2.msra.mxu0 0.0
        %1537 = vmatprep.subr.mxu0 0.0
        %1538 = vmatpush2.msra.mxu0 0.0
        %1539 = vmatprep.mubr.f32.mxu0 0.0
        %1540 = vmatmul.mubr.f32.gmra.mxu0 %v1473
        %v1541 = vpop.f32.mrf.mxu0
        %v1542 = vadd.f32 0.0, %v1541
        %v1543 = vpop.f32.mrf.mxu0
        %1544 = vdwg.mxu0
        %v1546 = vsel %vm1010, %v1105, 0
        %1548 = vmatprep.subr.mxu0 0.0
        %1549 = vmatpush1.msra.mxu0 0.0
        %1550 = vmatprep.subr.mxu0 0.0
        %1551 = vmatpush1.msra.mxu0 0.0
        %1552 = vmatprep.subr.mxu0 0.0
        %1553 = vmatpush1.msra.mxu0 0.0
        %1554 = vmatprep.subr.mxu0 0.0
        %1555 = vmatpush1.msra.mxu0 0.0
        %1556 = vmatprep.subr.mxu0 0.0
        %1557 = vmatpush1.msra.mxu0 0.0
        %1558 = vmatprep.subr.mxu0 0.0
        %1559 = vmatpush1.msra.mxu0 0.0
        %1560 = vmatprep.subr.mxu0 0.0
        %1561 = vmatpush1.msra.mxu0 0.0
        %1562 = vmatprep.subr.mxu0 0.0
        %1563 = vmatpush1.msra.mxu0 0.0
        %1564 = vmatprep.subr.mxu0 0.0
        %1565 = vmatpush1.msra.mxu0 0.0
        %1566 = vmatprep.subr.mxu0 0.0
        %1567 = vmatpush1.msra.mxu0 0.0
        %1568 = vmatprep.subr.mxu0 0.0
        %1569 = vmatpush1.msra.mxu0 0.0
        %1570 = vmatprep.subr.mxu0 0.0
        %1571 = vmatpush1.msra.mxu0 0.0
        %1572 = vmatprep.subr.mxu0 0.0
        %1573 = vmatpush1.msra.mxu0 0.0
        %1574 = vmatprep.subr.mxu0 0.0
        %1575 = vmatpush1.msra.mxu0 0.0
        %1576 = vmatprep.subr.mxu0 0.0
        %1577 = vmatpush1.msra.mxu0 0.0
        %1578 = vmatprep.subr.mxu0 0.0
        %1579 = vmatpush1.msra.mxu0 %v382
        %1580 = vmatprep.subr.mxu0 0.0
        %1581 = vmatpush2.msra.mxu0 0.0
        %1582 = vmatprep.subr.mxu0 0.0
        %1583 = vmatpush2.msra.mxu0 0.0
        %1584 = vmatprep.subr.mxu0 0.0
        %1585 = vmatpush2.msra.mxu0 0.0
        %1586 = vmatprep.subr.mxu0 0.0
        %1587 = vmatpush2.msra.mxu0 0.0
        %1588 = vmatprep.subr.mxu0 0.0
        %1589 = vmatpush2.msra.mxu0 0.0
        %1590 = vmatprep.subr.mxu0 0.0
        %1591 = vmatpush2.msra.mxu0 0.0
        %1592 = vmatprep.subr.mxu0 0.0
        %1593 = vmatpush2.msra.mxu0 0.0
        %1594 = vmatprep.subr.mxu0 0.0
        %1595 = vmatpush2.msra.mxu0 0.0
        %1596 = vmatprep.subr.mxu0 0.0
        %1597 = vmatpush2.msra.mxu0 0.0
        %1598 = vmatprep.subr.mxu0 0.0
        %1599 = vmatpush2.msra.mxu0 0.0
        %1600 = vmatprep.subr.mxu0 0.0
        %1601 = vmatpush2.msra.mxu0 0.0
        %1602 = vmatprep.subr.mxu0 0.0
        %1603 = vmatpush2.msra.mxu0 0.0
        %1604 = vmatprep.subr.mxu0 0.0
        %1605 = vmatpush2.msra.mxu0 0.0
        %1606 = vmatprep.subr.mxu0 0.0
        %1607 = vmatpush2.msra.mxu0 0.0
        %1608 = vmatprep.subr.mxu0 0.0
        %1609 = vmatpush2.msra.mxu0 0.0
        %1610 = vmatprep.subr.mxu0 0.0
        %1611 = vmatpush2.msra.mxu0 0.0
        %1612 = vmatprep.mubr.f32.mxu0 0.0
        %1613 = vmatmul.mubr.f32.gmra.mxu0 %v1546
        %v1614 = vpop.f32.mrf.mxu0
        %v1615 = vadd.f32 0.0, %v1614
        %v1616 = vpop.f32.mrf.mxu0
        %1617 = vdwg.mxu0
        %v1619 = vsel %vm1010, %v1106, 0
        %1621 = vmatprep.subr.mxu0 0.0
        %1622 = vmatpush1.msra.mxu0 0.0
        %1623 = vmatprep.subr.mxu0 0.0
        %1624 = vmatpush1.msra.mxu0 0.0
        %1625 = vmatprep.subr.mxu0 0.0
        %1626 = vmatpush1.msra.mxu0 0.0
        %1627 = vmatprep.subr.mxu0 0.0
        %1628 = vmatpush1.msra.mxu0 0.0
        %1629 = vmatprep.subr.mxu0 0.0
        %1630 = vmatpush1.msra.mxu0 0.0
        %1631 = vmatprep.subr.mxu0 0.0
        %1632 = vmatpush1.msra.mxu0 0.0
        %1633 = vmatprep.subr.mxu0 0.0
        %1634 = vmatpush1.msra.mxu0 0.0
        %1635 = vmatprep.subr.mxu0 0.0
        %1636 = vmatpush1.msra.mxu0 0.0
        %1637 = vmatprep.subr.mxu0 0.0
        %1638 = vmatpush1.msra.mxu0 0.0
        %1639 = vmatprep.subr.mxu0 0.0
        %1640 = vmatpush1.msra.mxu0 0.0
        %1641 = vmatprep.subr.mxu0 0.0
        %1642 = vmatpush1.msra.mxu0 0.0
        %1643 = vmatprep.subr.mxu0 0.0
        %1644 = vmatpush1.msra.mxu0 0.0
        %1645 = vmatprep.subr.mxu0 0.0
        %1646 = vmatpush1.msra.mxu0 0.0
        %1647 = vmatprep.subr.mxu0 0.0
        %1648 = vmatpush1.msra.mxu0 0.0
        %1649 = vmatprep.subr.mxu0 0.0
        %1650 = vmatpush1.msra.mxu0 0.0
        %1651 = vmatprep.subr.mxu0 0.0
        %1652 = vmatpush1.msra.mxu0 %v383
        %1653 = vmatprep.subr.mxu0 0.0
        %1654 = vmatpush2.msra.mxu0 0.0
        %1655 = vmatprep.subr.mxu0 0.0
        %1656 = vmatpush2.msra.mxu0 0.0
        %1657 = vmatprep.subr.mxu0 0.0
        %1658 = vmatpush2.msra.mxu0 0.0
        %1659 = vmatprep.subr.mxu0 0.0
        %1660 = vmatpush2.msra.mxu0 0.0
        %1661 = vmatprep.subr.mxu0 0.0
        %1662 = vmatpush2.msra.mxu0 0.0
        %1663 = vmatprep.subr.mxu0 0.0
        %1664 = vmatpush2.msra.mxu0 0.0
        %1665 = vmatprep.subr.mxu0 0.0
        %1666 = vmatpush2.msra.mxu0 0.0
        %1667 = vmatprep.subr.mxu0 0.0
        %1668 = vmatpush2.msra.mxu0 0.0
        %1669 = vmatprep.subr.mxu0 0.0
        %1670 = vmatpush2.msra.mxu0 0.0
        %1671 = vmatprep.subr.mxu0 0.0
        %1672 = vmatpush2.msra.mxu0 0.0
        %1673 = vmatprep.subr.mxu0 0.0
        %1674 = vmatpush2.msra.mxu0 0.0
        %1675 = vmatprep.subr.mxu0 0.0
        %1676 = vmatpush2.msra.mxu0 0.0
        %1677 = vmatprep.subr.mxu0 0.0
        %1678 = vmatpush2.msra.mxu0 0.0
        %1679 = vmatprep.subr.mxu0 0.0
        %1680 = vmatpush2.msra.mxu0 0.0
        %1681 = vmatprep.subr.mxu0 0.0
        %1682 = vmatpush2.msra.mxu0 0.0
        %1683 = vmatprep.subr.mxu0 0.0
        %1684 = vmatpush2.msra.mxu0 0.0
        %1685 = vmatprep.mubr.f32.mxu0 0.0
        %1686 = vmatmul.mubr.f32.gmra.mxu0 %v1619
        %v1687 = vpop.f32.mrf.mxu0
        %v1688 = vadd.f32 0.0, %v1687
        %v1689 = vpop.f32.mrf.mxu0
        %1690 = vdwg.mxu0
        %1691 = vst.msk [vmem:[%s355] sm:$0xff] %vm384, %v1177
        %1692 = vst.msk [vmem:[%s355 + $0x8] sm:$0xff] %vm384, %v1250
        %1693 = vst.msk [vmem:[%s355 + $0x10] sm:$0xff] %vm384, %v1323
        %1694 = vst.msk [vmem:[%s355 + $0x18] sm:$0xff] %vm384, %v1396
        %1695 = vst.msk [vmem:[%s355 + $0x20] sm:$0xff] %vm384, %v1469
        %1696 = vst.msk [vmem:[%s355 + $0x28] sm:$0xff] %vm384, %v1542
        %1697 = vst.msk [vmem:[%s355 + $0x30] sm:$0xff] %vm384, %v1615
        %1698 = vst.msk [vmem:[%s355 + $0x38] sm:$0xff] %vm384, %v1688
        %s1699 = sand.u32 %s159, 1
        %s1700 = scalar_lea.sflag [#allocation4], %s1699
        %s1701 = sand.u32 %s159, 1
        %s1702 = smul.addr %s1701, 64
        %s1703 = scalar_lea.vmem [#allocation10], %s1702
        // Predicated region
        $region53: #{tpu_custom_call.1} parent=35 // pred_check
          %p1704 = pneg %p169
        $region54: #{tpu_custom_call.1} parent=35 // pred_check_branch
          %1706 = sbr.rel (%p1704) target = $region56
        $region55: #{tpu_custom_call.1} parent=35 // pred_region
          %s1707 = smul.u32 8, %s32
          %s1709 = ssub.s32 1024, 1024
          %1710 = vsyncadd %s1700, %s1709
          %s1711 = smul.addr %s31, 8
          %s1712 = sadd.s32 %s1707, %s1711
          %s1713 = smul.addr %s1712, 128
          %s1714 = scalar_lea.hbm %s4, %s1713
          %s1715 = sshll.u32 %s1703, 4
          %s1716 = int_to_ptr.vmem [resolvable:$true] %s1715
          %1721 = dma.vmem_to_hbm [thread:$0]  %s1716, 1024, %s1714, %s1700, 128, 128, 8
        $region56: #{tpu_custom_call.1} parent=35 // pred_fallthru
          _
      $region36: #{tpu_custom_call.1} parent=5 // pred_fallthru
        _
      %p1722 = scmp.le.s32.totalorder 2, %s22
      // Predicated region
      $region57: #{tpu_custom_call.1} parent=5 // pred_check
        %p1723 = pneg %p1722
      $region58: #{tpu_custom_call.1} parent=5 // pred_check_branch
        %1725 = sbr.rel (%p1723) target = $region60
      $region59: #{tpu_custom_call.1} parent=5 // pred_region
        %s1726 = ssub.s32 %s22, 2
        // Predicated region
        $region61: #{tpu_custom_call.1} parent=59 // pred_check
          %p1727 = pneg %p175
        $region62: #{tpu_custom_call.1} parent=59 // pred_check_branch
          %1729 = sbr.rel (%p1727) target = $region64
        $region63: #{tpu_custom_call.1} parent=59 // pred_region
          %s1730 = sand.u32 %s160, 1
          %s1731 = scalar_lea.sflag [#allocation4], %s1730
          %s1732 = sand.u32 %s160, 1
          %s1733 = smul.addr %s1732, 64
          %s1734 = scalar_lea.vmem [#allocation10], %s1733
          %1735 = dma.done %s1731, 1024
        $region64: #{tpu_custom_call.1} parent=59 // pred_fallthru
          _
      $region60: #{tpu_custom_call.1} parent=5 // pred_fallthru
        _
    $region6: #{tpu_custom_call.1} parent=1 // loop_footer
      %s26 = sadd.s32 1, %s22
    $region7: #{tpu_custom_call.1} parent=1 // loop_footer_branch
      %21 = sbr.rel target = $region3
    $region8: #{tpu_custom_call.1} parent=1 // loop_exit
      _
    %1736 = vsyncpa [#allocation3], 1
    %s1737 = scalar_lea.sflag [#allocation3], 1
    %1738 = vsyncpa %s1737, 1
    %1739 = vsyncpa [#allocation6], 1
    %s1740 = scalar_lea.sflag [#allocation6], 1
    %1741 = vsyncpa %s1740, 1
    %1742 = vsyncpa [#allocation9], 1
    %s1743 = scalar_lea.sflag [#allocation9], 1
    %1744 = vsyncpa %s1743, 1
    %1745 = vsyncpa [#allocation4], 1
    %s1746 = scalar_lea.sflag [#allocation4], 1
    %1747 = vsyncpa %s1746, 1

</llo_original>
